<compile_context>
chip_gen: v7x
topology: tpu7x:2x2x1
jax: 0.10.0
libtpu: 0.0.40
codegen_flags: <defaults>
</compile_context>

<pallas_src>
import functools

import jax
import jax.numpy as jnp
from jax.experimental import pallas as pl
from jax.experimental.pallas import tpu as pltpu


# -----------------------------------------------------------------------------
# Kernel 1: fused QKV projection + bias + M-RoPE epilogue
# -----------------------------------------------------------------------------
def _qkv_rope_kernel(x_ref, w_ref, b_ref, cos_ref, sin_ref, o_ref, acc_ref, *,
                     head_dim, heads_per_block, num_rope_heads):
    j = pl.program_id(1)
    kk = pl.program_id(2)

    @pl.when(kk == 0)
    def _():
        acc_ref[...] = jnp.zeros_like(acc_ref)

    acc_ref[...] += jnp.dot(x_ref[...], w_ref[...],
                            preferred_element_type=jnp.float32)

    @pl.when(kk == pl.num_programs(2) - 1)
    def _():
        out = acc_ref[...] + b_ref[...]          # (tm, tn) f32
        cos = cos_ref[...]                       # (tm, D)  f32
        sin = sin_ref[...]                       # (tm, D)  f32, sign pre-folded
        half = head_dim // 2
        for g in range(heads_per_block):
            sl = slice(g * head_dim, (g + 1) * head_dim)
            xg = out[:, sl]
            # rotate_half(x)*sin == roll(x, D/2)*sin_signed  (sign folded in table)
            roped = xg * cos + pltpu.roll(xg, half, 1) * sin
            is_rope = (j * heads_per_block + g) < num_rope_heads   # q/k: rope, v: plain
            o_ref[:, sl] = jnp.where(is_rope, roped, xg).astype(o_ref.dtype)


def qkv_proj_rope(x, w_qkv, b_qkv, cos, sin_signed, *, head_dim, num_rope_heads,
                  tm=256, tn=256, tk=512):
    """x:(T,hidden) -> (T,(H+2*Hkv)*D); RoPE applied to the first num_rope_heads heads."""
    M, K = x.shape
    Kw, N = w_qkv.shape
    assert K == Kw
    tm, tn, tk = min(tm, M), min(tn, N), min(tk, K)
    tn = max(head_dim, (tn // head_dim) * head_dim)     # head-aligned column tiles
    assert M % tm == 0 and N % tn == 0 and K % tk == 0 and tn % head_dim == 0
    heads_per_block = tn // head_dim
    b2 = b_qkv.reshape(1, N).astype(jnp.float32)

    kern = functools.partial(_qkv_rope_kernel, head_dim=head_dim,
                             heads_per_block=heads_per_block,
                             num_rope_heads=num_rope_heads)
    return pl.pallas_call(
        kern,
        out_shape=jax.ShapeDtypeStruct((M, N), x.dtype),
        grid_spec=pltpu.PrefetchScalarGridSpec(
            num_scalar_prefetch=0,
            grid=(M // tm, N // tn, K // tk),
            in_specs=[
                pl.BlockSpec((tm, tk), lambda i, j, k: (i, k)),
                pl.BlockSpec((tk, tn), lambda i, j, k: (k, j)),
                pl.BlockSpec((1, tn), lambda i, j, k: (0, j)),
                pl.BlockSpec((tm, head_dim), lambda i, j, k: (i, 0)),
                pl.BlockSpec((tm, head_dim), lambda i, j, k: (i, 0)),
            ],
            out_specs=pl.BlockSpec((tm, tn), lambda i, j, k: (i, j)),
            scratch_shapes=[pltpu.VMEM((tm, tn), jnp.float32)],
        ),
        compiler_params=pltpu.CompilerParams(
            dimension_semantics=("parallel", "parallel", "arbitrary")),
    )(x, w_qkv, b2, cos, sin_signed)


# -----------------------------------------------------------------------------
# Kernel 2: bias-free tiled matmul (o_proj)
# -----------------------------------------------------------------------------
def _linear_kernel(x_ref, w_ref, o_ref, acc_ref):
    kk = pl.program_id(2)

    @pl.when(kk == 0)
    def _():
        acc_ref[...] = jnp.zeros_like(acc_ref)

    acc_ref[...] += jnp.dot(x_ref[...], w_ref[...],
                            preferred_element_type=jnp.float32)

    @pl.when(kk == pl.num_programs(2) - 1)
    def _():
        o_ref[...] = acc_ref[...].astype(o_ref.dtype)


def linear(x, w, *, tm=256, tn=256, tk=512, out_dtype=None):
    M, K = x.shape
    Kw, N = w.shape
    assert K == Kw
    tm, tn, tk = min(tm, M), min(tn, N), min(tk, K)
    assert M % tm == 0 and N % tn == 0 and K % tk == 0
    out_dtype = out_dtype or x.dtype
    return pl.pallas_call(
        _linear_kernel,
        out_shape=jax.ShapeDtypeStruct((M, N), out_dtype),
        grid_spec=pltpu.PrefetchScalarGridSpec(
            num_scalar_prefetch=0,
            grid=(M // tm, N // tn, K // tk),
            in_specs=[
                pl.BlockSpec((tm, tk), lambda i, j, k: (i, k)),
                pl.BlockSpec((tk, tn), lambda i, j, k: (k, j)),
            ],
            out_specs=pl.BlockSpec((tm, tn), lambda i, j, k: (i, j)),
            scratch_shapes=[pltpu.VMEM((tm, tn), jnp.float32)],
        ),
        compiler_params=pltpu.CompilerParams(
            dimension_semantics=("parallel", "parallel", "arbitrary")),
    )(x, w)


# -----------------------------------------------------------------------------
# Kernel 3: causal GQA flash attention on the fused (T, (H+2*Hkv)*D) slab
# -----------------------------------------------------------------------------
def _flash_kernel(q_ref, k_ref, v_ref, o_ref, m_sc, l_sc, acc_sc, *,
                  sm_scale, block_q, block_k, group, head_dim):
    qi = pl.program_id(1)
    ki = pl.program_id(2)

    @pl.when(ki == 0)
    def _():
        m_sc[...] = jnp.full_like(m_sc, -jnp.inf)
        l_sc[...] = jnp.zeros_like(l_sc)
        acc_sc[...] = jnp.zeros_like(acc_sc)

    q_start = qi * block_q
    k_start = ki * block_k

    def process(apply_mask):
        k = k_ref[...]                                 # (block_k, D)
        v = v_ref[...]
        if apply_mask:
            q_pos = q_start + jax.lax.broadcasted_iota(
                jnp.int32, (block_q, block_k), 0)
            k_pos = k_start + jax.lax.broadcasted_iota(
                jnp.int32, (block_q, block_k), 1)
            causal = q_pos >= k_pos
        for g in range(group):
            sl = slice(g * head_dim, (g + 1) * head_dim)
            q = q_ref[:, sl]                           # (block_q, D) lane-aligned
            s = jax.lax.dot_general(q, k, (((1,), (1,)), ((), ())),
                                    preferred_element_type=jnp.float32)
            s = s * sm_scale
            if apply_mask:
                s = jnp.where(causal, s, -jnp.inf)
            m_prev = m_sc[g]                           # (block_q, 1)
            m_new = jnp.maximum(m_prev, s.max(axis=-1, keepdims=True))
            alpha = jnp.exp(m_prev - m_new)
            p = jnp.exp(s - m_new)
            l_sc[g] = alpha * l_sc[g] + p.sum(axis=-1, keepdims=True)
            acc_sc[:, sl] = alpha * acc_sc[:, sl] + jnp.dot(
                p.astype(v.dtype), v, preferred_element_type=jnp.float32)
            m_sc[g] = m_new

    fully_visible = (k_start + block_k - 1) <= q_start        # no mask needed
    needed = k_start <= (q_start + block_q - 1)                # not fully masked
    partial = jnp.logical_and(needed, jnp.logical_not(fully_visible))

    @pl.when(fully_visible)
    def _():
        process(False)

    @pl.when(partial)
    def _():
        process(True)

    @pl.when(ki == pl.num_programs(2) - 1)
    def _():
        for g in range(group):
            sl = slice(g * head_dim, (g + 1) * head_dim)
            inv_l = pl.reciprocal(l_sc[g], approx=True)
            o_ref[:, sl] = (acc_sc[:, sl] * inv_l).astype(o_ref.dtype)


def causal_gqa_attention_fused(qkv, *, num_heads, num_kv_heads, head_dim,
                               seq_len, sm_scale, block_q=256, block_k=256):
    """qkv: (T, (H+2*Hkv)*D) with [q heads | k heads | v heads] column layout.
    Returns (T, H*D) causal attention output (repeat_interleave GQA semantics)."""
    T = seq_len
    H, Hkv, D = num_heads, num_kv_heads, head_dim
    assert H % Hkv == 0
    group = H // Hkv
    block_q = min(block_q, T)
    block_k = min(block_k, T)
    assert T % block_q == 0 and T % block_k == 0

    def q_map(kvh, qi, ki):
        return (qi, kvh)                                # block width = group*D

    def _last_needed(qi):
        return (qi * block_q + block_q - 1) // block_k  # causal: last useful k blk

    def k_map(kvh, qi, ki):
        return (jnp.minimum(ki, _last_needed(qi)), H + kvh)

    def v_map(kvh, qi, ki):
        return (jnp.minimum(ki, _last_needed(qi)), H + Hkv + kvh)

    itemsize = jnp.dtype(qkv.dtype).itemsize
    cost = pl.CostEstimate(
        flops=2 * H * T * T * D,                         # causal ~= half of 4*H*T*T*D
        transcendentals=H * T * T // 2,
        bytes_accessed=(2 * H * T * D
                        + 2 * Hkv * T * D * max(1, T // (2 * block_q))) * itemsize,
    )
    kern = functools.partial(_flash_kernel, sm_scale=sm_scale, block_q=block_q,
                             block_k=block_k, group=group, head_dim=D)
    return pl.pallas_call(
        kern,
        out_shape=jax.ShapeDtypeStruct((T, H * D), qkv.dtype),
        grid_spec=pltpu.PrefetchScalarGridSpec(
            num_scalar_prefetch=0,
            grid=(Hkv, T // block_q, T // block_k),
            in_specs=[
                pl.BlockSpec((block_q, group * D), q_map),
                pl.BlockSpec((block_k, D), k_map),
                pl.BlockSpec((block_k, D), v_map),
            ],
            out_specs=pl.BlockSpec((block_q, group * D), q_map),
            scratch_shapes=[
                pltpu.VMEM((group, block_q, 1), jnp.float32),   # m
                pltpu.VMEM((group, block_q, 1), jnp.float32),   # l
                pltpu.VMEM((block_q, group * D), jnp.float32),  # acc
            ],
        ),
        compiler_params=pltpu.CompilerParams(
            dimension_semantics=("parallel", "parallel", "arbitrary")),
        cost_estimate=cost,
    )(qkv, qkv, qkv)


# -----------------------------------------------------------------------------
# M-RoPE section combine (module semantics: [x*2 for x in mrope_section]),
# plus the rotate_half sign folded into the sin table (wrapper-side, once).
# -----------------------------------------------------------------------------
def mrope_combine(cos3, sin3, mrope_section, head_dim):
    sec2 = [s * 2 for s in mrope_section]
    assert sum(sec2) == head_dim
    cos_parts, sin_parts, start = [], [], 0
    for i, sz in enumerate(sec2):
        cos_parts.append(cos3[i % 3, :, start:start + sz])
        sin_parts.append(sin3[i % 3, :, start:start + sz])
        start += sz
    cos_c = jnp.concatenate(cos_parts, axis=-1).astype(jnp.float32)
    sin_c = jnp.concatenate(sin_parts, axis=-1).astype(jnp.float32)
    half = head_dim // 2
    lane = jnp.arange(head_dim)
    sin_signed = jnp.where(lane[None, :] < half, -sin_c, sin_c)
    return cos_c, sin_signed


# -----------------------------------------------------------------------------
# Full forward (mirrors Qwen2_5_VLAttention.forward; returns attn_output)
# -----------------------------------------------------------------------------
def qwen2_5_vl_attention(hidden_states, position_embeddings, params, *,
                         num_heads, num_kv_heads, head_dim, mrope_section):
    T, _hidden = hidden_states.shape
    H, Hkv, D = num_heads, num_kv_heads, head_dim
    cos3, sin3 = position_embeddings

    # Fuse the three projection weights/biases along N (in a real model this is
    # done once at load time, not per forward).
    w_qkv = jnp.concatenate([params["wq"], params["wk"], params["wv"]], axis=1)
    b_qkv = jnp.concatenate([params["bq"], params["bk"], params["bv"]], axis=0)

    cos_c, sin_signed = mrope_combine(cos3, sin3, mrope_section, D)

    qkv = qkv_proj_rope(hidden_states, w_qkv, b_qkv, cos_c, sin_signed,
                        head_dim=D, num_rope_heads=H + Hkv)

    attn = causal_gqa_attention_fused(
        qkv, num_heads=H, num_kv_heads=Hkv, head_dim=D, seq_len=T,
        sm_scale=D ** -0.5)

    return linear(attn, params["wo"])


# -----------------------------------------------------------------------------
# Pure-JAX reference (mirrors the PyTorch module, independent of the kernels)
# -----------------------------------------------------------------------------
def reference_forward(hidden_states, position_embeddings, params, *,
                      num_heads, num_kv_heads, head_dim, mrope_section):
    f32 = jnp.float32
    dt = hidden_states.dtype
    T, _hidden = hidden_states.shape
    cos3, sin3 = position_embeddings
    xf = hidden_states.astype(f32)

    q = xf @ params["wq"].astype(f32) + params["bq"]
    k = xf @ params["wk"].astype(f32) + params["bk"]
    v = (xf @ params["wv"].astype(f32) + params["bv"]).astype(dt)

    q = q.reshape(T, num_heads, head_dim)
    k = k.reshape(T, num_kv_heads, head_dim)
    v = v.reshape(T, num_kv_heads, head_dim)

    # module semantics: sections doubled element-wise, contiguous split
    sec2 = [s * 2 for s in mrope_section]
    cos_parts, sin_parts, start = [], [], 0
    for i, sz in enumerate(sec2):
        cos_parts.append(cos3[i % 3, :, start:start + sz])
        sin_parts.append(sin3[i % 3, :, start:start + sz])
        start += sz
    cos_c = jnp.concatenate(cos_parts, axis=-1).astype(f32)
    sin_c = jnp.concatenate(sin_parts, axis=-1).astype(f32)

    def rotate_half(x):
        h = x.shape[-1] // 2
        return jnp.concatenate([-x[..., h:], x[..., :h]], axis=-1)

    def rope(t):
        return t * cos_c[:, None, :] + rotate_half(t) * sin_c[:, None, :]

    q = rope(q).astype(dt)
    k = rope(k).astype(dt)

    group = num_heads // num_kv_heads
    k = jnp.repeat(k, group, axis=1)          # repeat_interleave on heads
    v = jnp.repeat(v, group, axis=1)

    qf = q.transpose(1, 0, 2).astype(f32)
    kf = k.transpose(1, 0, 2).astype(f32)
    vf = v.transpose(1, 0, 2).astype(f32)

    s = jnp.einsum("htd,hsd->hts", qf, kf) * head_dim ** -0.5
    mask = jnp.tril(jnp.ones((T, T), dtype=bool))
    s = jnp.where(mask[None], s, -jnp.inf)
    p = jax.nn.softmax(s, axis=-1)
    o = jnp.einsum("hts,hsd->htd", p, vf)
    o2d = o.transpose(1, 0, 2).reshape(T, num_heads * head_dim).astype(dt)
    return (o2d.astype(f32) @ params["wo"].astype(f32)).astype(dt)


if __name__ == "__main__":
    T = 256                 # total_tokens
    HIDDEN = 256            # hidden_size
    NUM_HEADS = 2
    NUM_KV_HEADS = 1        # GQA (group = 2)
    HEAD_DIM = 128          # real Qwen2.5-VL head_dim (lane-dense on TPU)
    MROPE_SECTION = (16, 24, 24)   # sums to HEAD_DIM // 2 (as in the 7B config)
    BASE = 1000000.0
    DTYPE = jnp.bfloat16

    key = jax.random.PRNGKey(0)
    kx, kp, kq, kk, kv, ko, kbq, kbk, kbv = jax.random.split(key, 9)

    hidden_states = jax.random.normal(kx, (T, HIDDEN), jnp.float32).astype(DTYPE)

    params = {
        "wq": (jax.random.normal(kq, (HIDDEN, NUM_HEADS * HEAD_DIM), jnp.float32)
               * HIDDEN ** -0.5).astype(DTYPE),
        "bq": jax.random.normal(kbq, (NUM_HEADS * HEAD_DIM,), jnp.float32) * 0.02,
        "wk": (jax.random.normal(kk, (HIDDEN, NUM_KV_HEADS * HEAD_DIM), jnp.float32)
               * HIDDEN ** -0.5).astype(DTYPE),
        "bk": jax.random.normal(kbk, (NUM_KV_HEADS * HEAD_DIM,), jnp.float32) * 0.02,
        "wv": (jax.random.normal(kv, (HIDDEN, NUM_KV_HEADS * HEAD_DIM), jnp.float32)
               * HIDDEN ** -0.5).astype(DTYPE),
        "bv": jax.random.normal(kbv, (NUM_KV_HEADS * HEAD_DIM,), jnp.float32) * 0.02,
        "wo": (jax.random.normal(ko, (NUM_HEADS * HEAD_DIM, HIDDEN), jnp.float32)
               * (NUM_HEADS * HEAD_DIM) ** -0.5).astype(DTYPE),
    }

    # position_embeddings input: (cos, sin), each (3, T, head_dim); the 3 rows
    # are the temporal/height/width M-RoPE phase tables produced by
    # Qwen2_5_VLRotaryEmbedding.
    pos_ids = jax.random.randint(kp, (3, T), minval=0, maxval=128, dtype=jnp.int32)
    inv_freq = 1.0 / (BASE ** (jnp.arange(0, HEAD_DIM, 2, dtype=jnp.float32)
                               / HEAD_DIM))
    freqs = pos_ids.astype(jnp.float32)[..., None] * inv_freq[None, None, :]
    emb = jnp.concatenate([freqs, freqs], axis=-1)
    cos3, sin3 = jnp.cos(emb), jnp.sin(emb)

    out = qwen2_5_vl_attention(
        hidden_states, (cos3, sin3), params,
        num_heads=NUM_HEADS, num_kv_heads=NUM_KV_HEADS,
        head_dim=HEAD_DIM, mrope_section=MROPE_SECTION)
    jax.block_until_ready(out)

    ref = reference_forward(
        hidden_states, (cos3, sin3), params,
        num_heads=NUM_HEADS, num_kv_heads=NUM_KV_HEADS,
        head_dim=HEAD_DIM, mrope_section=MROPE_SECTION)

    assert out.shape == (T, HIDDEN) and out.dtype == DTYPE
    max_diff = jnp.max(jnp.abs(out.astype(jnp.float32) - ref.astype(jnp.float32)))
    assert bool(max_diff < 5e-2), f"max abs diff too large: {max_diff}"
    print("KERNEL_OK")
</pallas_src>

<mosaic_0001>
module attributes {stable_mosaic.version = 11 : i64} {
  func.func @_qkv_rope_kernel(%arg0: i32, %arg1: i32, %arg2: i32, %arg3: memref<256x256xbf16, #tpu.memory_space<vmem>>, %arg4: memref<256x256xbf16, #tpu.memory_space<vmem>>, %arg5: memref<1x256xf32, #tpu.memory_space<vmem>>, %arg6: memref<256x128xf32, #tpu.memory_space<vmem>>, %arg7: memref<256x128xf32, #tpu.memory_space<vmem>>, %arg8: memref<256x256xbf16, #tpu.memory_space<vmem>>, %arg9: memref<256x256xf32, #tpu.memory_space<vmem>>) attributes {dimension_semantics = [#tpu.dimension_semantics<parallel>, #tpu.dimension_semantics<parallel>, #tpu.dimension_semantics<arbitrary>], iteration_bounds = array<i64: 1, 2, 1>, scalar_prefetch = 0 : i64, scratch_operands = 1 : i64, tpu.core_type = #tpu.core_type<tc>, window_params = [{transform_indices = @transform_0, window_bounds = array<i64: 256, 256>}, {transform_indices = @transform_1, window_bounds = array<i64: 256, 256>}, {transform_indices = @transform_2, window_bounds = array<i64: 1, 256>}, {transform_indices = @transform_3, window_bounds = array<i64: 256, 128>}, {transform_indices = @transform_4, window_bounds = array<i64: 256, 128>}, {transform_indices = @transform_5, window_bounds = array<i64: 256, 256>}]} {
    %c0_i32 = arith.constant 0 : i32
    %0 = arith.cmpi eq, %arg2, %c0_i32 : i32
    %1 = arith.extui %0 : i1 to i32
    %c0_i32_0 = arith.constant 0 : i32
    %2 = arith.cmpi ne, %1, %c0_i32_0 : i32
    scf.if %2 {
      %cst_10 = arith.constant 0.000000e+00 : f32
      %12 = vector.broadcast %cst_10 : f32 to vector<256x256xf32>
      %c0_11 = arith.constant 0 : index
      %c0_12 = arith.constant 0 : index
      %13 = vector.load %arg9[%c0_11, %c0_12] : memref<256x256xf32, #tpu.memory_space<vmem>>, vector<256x256xf32>
      tpu.vector_store %arg9[%c0_11, %c0_12], %12 {strides = array<i32>} : memref<256x256xf32, #tpu.memory_space<vmem>>, vector<256x256xf32>,
    } else {
    }
    %c0 = arith.constant 0 : index
    %c0_1 = arith.constant 0 : index
    %3 = vector.load %arg9[%c0, %c0_1] : memref<256x256xf32, #tpu.memory_space<vmem>>, vector<256x256xf32>
    %c0_2 = arith.constant 0 : index
    %c0_3 = arith.constant 0 : index
    %4 = vector.load %arg3[%c0_2, %c0_3] : memref<256x256xbf16, #tpu.memory_space<vmem>>, vector<256x256xbf16>
    %c0_4 = arith.constant 0 : index
    %c0_5 = arith.constant 0 : index
    %5 = vector.load %arg4[%c0_4, %c0_5] : memref<256x256xbf16, #tpu.memory_space<vmem>>, vector<256x256xbf16>
    %cst = arith.constant dense<0.000000e+00> : vector<256x256xf32>
    %6 = tpu.matmul %4, %5, %cst {dimension_numbers = #tpu.dot_dimension_numbers<[1], [0], [0], [1], [0, 0, 1, 1], [], []>} : vector<256x256xbf16>, vector<256x256xbf16>, vector<256x256xf32> -> vector<256x256xf32>
    %7 = arith.addf %3, %6 : vector<256x256xf32>
    %c0_6 = arith.constant 0 : index
    %c0_7 = arith.constant 0 : index
    %8 = vector.load %arg9[%c0_6, %c0_7] : memref<256x256xf32, #tpu.memory_space<vmem>>, vector<256x256xf32>
    tpu.vector_store %arg9[%c0_6, %c0_7], %7 {strides = array<i32>} : memref<256x256xf32, #tpu.memory_space<vmem>>, vector<256x256xf32>,
    %c0_i32_8 = arith.constant 0 : i32
    %9 = arith.cmpi eq, %arg2, %c0_i32_8 : i32
    %10 = arith.extui %9 : i1 to i32
    %c0_i32_9 = arith.constant 0 : i32
    %11 = arith.cmpi ne, %10, %c0_i32_9 : i32
    scf.if %11 {
      %c0_10 = arith.constant 0 : index
      %c0_11 = arith.constant 0 : index
      %12 = vector.load %arg9[%c0_10, %c0_11] : memref<256x256xf32, #tpu.memory_space<vmem>>, vector<256x256xf32>
      %c0_12 = arith.constant 0 : index
      %c0_13 = arith.constant 0 : index
      %13 = vector.load %arg5[%c0_12, %c0_13] : memref<1x256xf32, #tpu.memory_space<vmem>>, vector<1x256xf32>
      %14 = vector.broadcast %13 : vector<1x256xf32> to vector<256x256xf32>
      %15 = arith.addf %12, %14 : vector<256x256xf32>
      %c0_14 = arith.constant 0 : index
      %c0_15 = arith.constant 0 : index
      %16 = vector.load %arg6[%c0_14, %c0_15] : memref<256x128xf32, #tpu.memory_space<vmem>>, vector<256x128xf32>
      %c0_16 = arith.constant 0 : index
      %c0_17 = arith.constant 0 : index
      %17 = vector.load %arg7[%c0_16, %c0_17] : memref<256x128xf32, #tpu.memory_space<vmem>>, vector<256x128xf32>
      %18 = vector.extract_strided_slice %15 {offsets = [0, 0], sizes = [256, 128], strides = [1, 1]} : vector<256x256xf32> to vector<256x128xf32>
      %19 = arith.mulf %18, %16 : vector<256x128xf32>
      %c64_i32 = arith.constant 64 : i32
      %20 = tpu.dynamic_rotate %18 by %c64_i32 dim 1 : vector<256x128xf32>, i32 -> vector<256x128xf32>
      %21 = arith.mulf %20, %17 : vector<256x128xf32>
      %22 = arith.addf %19, %21 : vector<256x128xf32>
      %c2_i32 = arith.constant 2 : i32
      %23 = arith.muli %arg1, %c2_i32 : i32
      %c0_i32_18 = arith.constant 0 : i32
      %24 = arith.addi %23, %c0_i32_18 : i32
      %c3_i32 = arith.constant 3 : i32
      %25 = arith.cmpi slt, %24, %c3_i32 : i32
      %26 = arith.select %25, %22, %18 : vector<256x128xf32>
      %27 = arith.truncf %26 : vector<256x128xf32> to vector<256x128xbf16>
      %c0_19 = arith.constant 0 : index
      %c0_20 = arith.constant 0 : index
      %28 = vector.load %arg8[%c0_19, %c0_20] : memref<256x256xbf16, #tpu.memory_space<vmem>>, vector<256x128xbf16>
      tpu.vector_store %arg8[%c0_19, %c0_20], %27 {strides = array<i32>} : memref<256x256xbf16, #tpu.memory_space<vmem>>, vector<256x128xbf16>,
      %29 = vector.extract_strided_slice %15 {offsets = [0, 128], sizes = [256, 128], strides = [1, 1]} : vector<256x256xf32> to vector<256x128xf32>
      %30 = arith.mulf %29, %16 : vector<256x128xf32>
      %c64_i32_21 = arith.constant 64 : i32
      %31 = tpu.dynamic_rotate %29 by %c64_i32_21 dim 1 : vector<256x128xf32>, i32 -> vector<256x128xf32>
      %32 = arith.mulf %31, %17 : vector<256x128xf32>
      %33 = arith.addf %30, %32 : vector<256x128xf32>
      %c2_i32_22 = arith.constant 2 : i32
      %34 = arith.muli %arg1, %c2_i32_22 : i32
      %c1_i32 = arith.constant 1 : i32
      %35 = arith.addi %34, %c1_i32 : i32
      %c3_i32_23 = arith.constant 3 : i32
      %36 = arith.cmpi slt, %35, %c3_i32_23 : i32
      %37 = arith.select %36, %33, %29 : vector<256x128xf32>
      %38 = arith.truncf %37 : vector<256x128xf32> to vector<256x128xbf16>
      %c0_24 = arith.constant 0 : index
      %c128 = arith.constant 128 : index
      %39 = vector.load %arg8[%c0_24, %c128] : memref<256x256xbf16, #tpu.memory_space<vmem>>, vector<256x128xbf16>
      tpu.vector_store %arg8[%c0_24, %c128], %38 {strides = array<i32>} : memref<256x256xbf16, #tpu.memory_space<vmem>>, vector<256x128xbf16>,
    } else {
    }
    return
  }
  func.func @transform_0(%arg0: i32, %arg1: i32, %arg2: i32) -> (i32, i32) {
    %c0_i32 = arith.constant 0 : i32
    return %arg0, %arg2 : i32, i32
  }
  func.func @transform_1(%arg0: i32, %arg1: i32, %arg2: i32) -> (i32, i32) {
    %c0_i32 = arith.constant 0 : i32
    return %arg2, %arg1 : i32, i32
  }
  func.func @transform_2(%arg0: i32, %arg1: i32, %arg2: i32) -> (i32, i32) {
    %c0_i32 = arith.constant 0 : i32
    %c0_i32_0 = arith.constant 0 : i32
    return %c0_i32, %arg1 : i32, i32
  }
  func.func @transform_3(%arg0: i32, %arg1: i32, %arg2: i32) -> (i32, i32) {
    %c0_i32 = arith.constant 0 : i32
    %c0_i32_0 = arith.constant 0 : i32
    return %arg0, %c0_i32 : i32, i32
  }
  func.func @transform_4(%arg0: i32, %arg1: i32, %arg2: i32) -> (i32, i32) {
    %c0_i32 = arith.constant 0 : i32
    %c0_i32_0 = arith.constant 0 : i32
    return %arg0, %c0_i32 : i32, i32
  }
  func.func @transform_5(%arg0: i32, %arg1: i32, %arg2: i32) -> (i32, i32) {
    %c0_i32 = arith.constant 0 : i32
    return %arg0, %arg1 : i32, i32
  }
}

</mosaic_0001>

<llo_original>
// kernel: tpu_custom_call.1
$region0: #{tpu_custom_call.1}
  #allocation0 [shape = 'u32[]', space=smem, size = 0x4, offset = 0x4, fixed_abs, tag = 'smem constant byte address 0x4 - core index']
  #allocation1 [shape = 'u32[144,128]{1,0:T(1,128)}', space=vmem, size = 0x12000, scoped, tag = 'internal scratch']
  #allocation2 [shape = 'f32[256,256]{1,0:T(8,128)}', space=vmem, size = 0x40000, scoped, tag = 'scratch operand']
  %s0 = inlined_call_operand.hbm [shape: bf16[256,256], index: 0, kind: input, shape index: {}]
  %s1 = inlined_call_operand.hbm [shape: bf16[256,512], index: 1, kind: input, shape index: {}]
  %s2 = inlined_call_operand.vmem [shape: f32[1,512], index: 2, kind: input, shape index: {}]
  %s3 = inlined_call_operand.hbm [shape: f32[256,128], index: 3, kind: input, shape index: {}]
  %s4 = inlined_call_operand.hbm [shape: f32[256,128], index: 4, kind: input, shape index: {}]
  %s5 = inlined_call_operand.hbm [shape: bf16[256,512], index: 5, kind: output, shape index: {}]
  %s6 = sld [smem:[#allocation0]]
  $region77: #{tpu_custom_call.1} parent=0
    _
  %s8 = ssub.s32 1, %s6
  %s9 = scalar_select 0, %s8, %s6
  $region1: #{tpu_custom_call.1} parent=0
    #allocation3 [shape = 'u8[131072]{0}', space=vmem, size = 0x20000, scoped, tag = 'input window, operand 0, single buffered']
    #allocation4 [shape = 's32[2]{0}', space=sflag, size = 0x8, scoped, tag = 'scoped memory for tpu_custom_call.1']
    #allocation5 [shape = 's32[2]{0}', space=sflag, size = 0x8, scoped, tag = 'scoped memory for tpu_custom_call.1']
    #allocation6 [shape = 'u8[262144]{0}', space=vmem, size = 0x40000, scoped, tag = 'input window, operand 1']
    #allocation7 [shape = 's32[2]{0}', space=sflag, size = 0x8, scoped, tag = 'scoped memory for tpu_custom_call.1']
    #allocation8 [shape = 'u8[131072]{0}', space=vmem, size = 0x20000, scoped, tag = 'input window, operand 3, single buffered']
    #allocation9 [shape = 'u8[131072]{0}', space=vmem, size = 0x20000, scoped, tag = 'input window, operand 4, single buffered']
    #allocation10 [shape = 's32[1]{0}', space=sflag, size = 0x4, scoped, tag = 'scoped memory for tpu_custom_call.1']
    #allocation11 [shape = 'u8[262144]{0}', space=vmem, size = 0x40000, scoped, tag = 'output window, operand 0']
    %10 = vsyncpa [#allocation4], 0
    %11 = vsyncpa [#allocation7], 0
    %s12 = scalar_lea.sflag [#allocation7], 1
    %13 = vsyncpa %s12, 0
    %14 = vsyncpa [#allocation10], 0
    %15 = vsyncpa [#allocation5], 0
    %s16 = scalar_lea.sflag [#allocation5], 1
    %17 = vsyncpa %s16, 0
    loop: start=0, step=1, limit=4
    $region2: #{tpu_custom_call.1} parent=1 // loop_pre_header
      _
    $region3: #{tpu_custom_call.1} parent=1 // loop_header
      %s19 = sphi 0, %s23
      %p20 = scmp.ge.s32.totalorder %s19, 4
      %s26 = sphi 0, %s45
      %s27 = sphi 0, %s41
      %s28 = sphi 0, %s37
      %s29 = sphi 0, %s26
      %s30 = sphi 0, %s27
      %s31 = sphi 0, %s28
      %s32 = sphi 0, %s29
      %s33 = sphi 0, %s30
      %s34 = sphi 0, %s31
      %s50 = sphi 0, %s52
      %s53 = sphi 0, %s50
      %s54 = sphi 0, %s53
      %s70 = sphi 0, %s54
      %s78 = sphi 0, %s80
      %s81 = sphi 0, %s78
      %s82 = sphi 0, %s81
      %s98 = sphi 0, %s82
      %s104 = sphi 0, %s106
      %s107 = sphi 0, %s104
      %s108 = sphi 0, %s107
      %s124 = sphi 0, %s108
      %s130 = sphi 0, %s132
      %s133 = sphi 0, %s130
      %s134 = sphi 0, %s133
      %s150 = sphi 0, %s134
      %s156 = sphi 0, %s158
      %s159 = sphi 0, %s156
      %s160 = sphi 0, %s159
      %s176 = sphi 0, %s160
      %s184 = sphi 0, %s186
      %s187 = sphi 0, %s184
      %s188 = sphi 0, %s187
      %s204 = sphi 0, %s188
    $region4: #{tpu_custom_call.1} parent=1 // loop_header_branch
      %22 = sbr.rel (%p20) target = $region8
    $region5: #{tpu_custom_call.1} parent=1 // loop_body
      %s24 = ssub.s32 %s19, 1
      %s25 = ssub.s32 %s19, 2
      %s35 = sadd.s32 1, %s28
      %p36 = scmp.ge.s32.totalorder %s35, 1
      %s37 = scalar_select %p36, 0, %s35
      %s38 = sadd.s32 1, %s27
      %s39 = scalar_select %p36, %s38, %s27
      %p40 = scmp.ge.s32.totalorder %s39, 2
      %s41 = scalar_select %p40, 0, %s39
      %s42 = sadd.s32 1, %s26
      %s43 = scalar_select %p40, %s42, %s26
      %p44 = scmp.ge.s32.totalorder %s43, 1
      %s45 = scalar_select %p44, 0, %s43
      %s46 = ssub.s32 %s26, %s45
      %s47 = ssub.s32 %s28, %s37
      %s48 = sor.u32 %s46, %s47
      %p49 = scmp.eq.s32.totalorder %s48, 0
      %s51 = sadd.s32 %s50, 1
      %s52 = scalar_select %p49, %s50, %s51
      %p55 = pneg %p49
      %p56 = scmp.eq.s32.totalorder %s19, 1
      %p57 = por %p55, %p56
      %p58 = scmp.ne.s32.totalorder %s50, %s53
      %p59 = scmp.eq.s32.totalorder %s19, 0
      %p60 = por %p58, %p59
      %p61 = scmp.ne.s32.totalorder %s50, %s53
      %p62 = scmp.eq.s32.totalorder %s24, 1
      %p63 = por %p61, %p62
      %p64 = scmp.ne.s32.totalorder %s53, %s54
      %p65 = scmp.eq.s32.totalorder %s24, 0
      %p66 = por %p64, %p65
      %p67 = scmp.ne.s32.totalorder %s53, %s54
      %p68 = scmp.eq.s32.totalorder %s25, 1
      %p69 = por %p67, %p68
      %p71 = scmp.ne.s32.totalorder %s54, %s70
      %p72 = scmp.eq.s32.totalorder %s25, 0
      %p73 = por %p71, %p72
      %s74 = ssub.s32 %s28, %s37
      %s75 = ssub.s32 %s27, %s41
      %s76 = sor.u32 %s74, %s75
      %p77 = scmp.eq.s32.totalorder %s76, 0
      %s79 = sadd.s32 %s78, 1
      %s80 = scalar_select %p77, %s78, %s79
      %p83 = pneg %p77
      %p84 = scmp.eq.s32.totalorder %s19, 1
      %p85 = por %p83, %p84
      %p86 = scmp.ne.s32.totalorder %s78, %s81
      %p87 = scmp.eq.s32.totalorder %s19, 0
      %p88 = por %p86, %p87
      %p89 = scmp.ne.s32.totalorder %s78, %s81
      %p90 = scmp.eq.s32.totalorder %s24, 1
      %p91 = por %p89, %p90
      %p92 = scmp.ne.s32.totalorder %s81, %s82
      %p93 = scmp.eq.s32.totalorder %s24, 0
      %p94 = por %p92, %p93
      %p95 = scmp.ne.s32.totalorder %s81, %s82
      %p96 = scmp.eq.s32.totalorder %s25, 1
      %p97 = por %p95, %p96
      %p99 = scmp.ne.s32.totalorder %s82, %s98
      %p100 = scmp.eq.s32.totalorder %s25, 0
      %p101 = por %p99, %p100
      %s102 = ssub.s32 %s27, %s41
      %p103 = scmp.eq.s32.totalorder %s102, 0
      %s105 = sadd.s32 %s104, 1
      %s106 = scalar_select %p103, %s104, %s105
      %p109 = pneg %p103
      %p110 = scmp.eq.s32.totalorder %s19, 1
      %p111 = por %p109, %p110
      %p112 = scmp.ne.s32.totalorder %s104, %s107
      %p113 = scmp.eq.s32.totalorder %s19, 0
      %p114 = por %p112, %p113
      %p115 = scmp.ne.s32.totalorder %s104, %s107
      %p116 = scmp.eq.s32.totalorder %s24, 1
      %p117 = por %p115, %p116
      %p118 = scmp.ne.s32.totalorder %s107, %s108
      %p119 = scmp.eq.s32.totalorder %s24, 0
      %p120 = por %p118, %p119
      %p121 = scmp.ne.s32.totalorder %s107, %s108
      %p122 = scmp.eq.s32.totalorder %s25, 1
      %p123 = por %p121, %p122
      %p125 = scmp.ne.s32.totalorder %s108, %s124
      %p126 = scmp.eq.s32.totalorder %s25, 0
      %p127 = por %p125, %p126
      %s128 = ssub.s32 %s26, %s45
      %p129 = scmp.eq.s32.totalorder %s128, 0
      %s131 = sadd.s32 %s130, 1
      %s132 = scalar_select %p129, %s130, %s131
      %p135 = pneg %p129
      %p136 = scmp.eq.s32.totalorder %s19, 1
      %p137 = por %p135, %p136
      %p138 = scmp.ne.s32.totalorder %s130, %s133
      %p139 = scmp.eq.s32.totalorder %s19, 0
      %p140 = por %p138, %p139
      %p141 = scmp.ne.s32.totalorder %s130, %s133
      %p142 = scmp.eq.s32.totalorder %s24, 1
      %p143 = por %p141, %p142
      %p144 = scmp.ne.s32.totalorder %s133, %s134
      %p145 = scmp.eq.s32.totalorder %s24, 0
      %p146 = por %p144, %p145
      %p147 = scmp.ne.s32.totalorder %s133, %s134
      %p148 = scmp.eq.s32.totalorder %s25, 1
      %p149 = por %p147, %p148
      %p151 = scmp.ne.s32.totalorder %s134, %s150
      %p152 = scmp.eq.s32.totalorder %s25, 0
      %p153 = por %p151, %p152
      %s154 = ssub.s32 %s26, %s45
      %p155 = scmp.eq.s32.totalorder %s154, 0
      %s157 = sadd.s32 %s156, 1
      %s158 = scalar_select %p155, %s156, %s157
      %p161 = pneg %p155
      %p162 = scmp.eq.s32.totalorder %s19, 1
      %p163 = por %p161, %p162
      %p164 = scmp.ne.s32.totalorder %s156, %s159
      %p165 = scmp.eq.s32.totalorder %s19, 0
      %p166 = por %p164, %p165
      %p167 = scmp.ne.s32.totalorder %s156, %s159
      %p168 = scmp.eq.s32.totalorder %s24, 1
      %p169 = por %p167, %p168
      %p170 = scmp.ne.s32.totalorder %s159, %s160
      %p171 = scmp.eq.s32.totalorder %s24, 0
      %p172 = por %p170, %p171
      %p173 = scmp.ne.s32.totalorder %s159, %s160
      %p174 = scmp.eq.s32.totalorder %s25, 1
      %p175 = por %p173, %p174
      %p177 = scmp.ne.s32.totalorder %s160, %s176
      %p178 = scmp.eq.s32.totalorder %s25, 0
      %p179 = por %p177, %p178
      %s180 = ssub.s32 %s26, %s45
      %s181 = ssub.s32 %s27, %s41
      %s182 = sor.u32 %s180, %s181
      %p183 = scmp.eq.s32.totalorder %s182, 0
      %s185 = sadd.s32 %s184, 1
      %s186 = scalar_select %p183, %s184, %s185
      %p189 = pneg %p183
      %p190 = scmp.eq.s32.totalorder %s19, 1
      %p191 = por %p189, %p190
      %p192 = scmp.ne.s32.totalorder %s184, %s187
      %p193 = scmp.eq.s32.totalorder %s19, 0
      %p194 = por %p192, %p193
      %p195 = scmp.ne.s32.totalorder %s184, %s187
      %p196 = scmp.eq.s32.totalorder %s24, 1
      %p197 = por %p195, %p196
      %p198 = scmp.ne.s32.totalorder %s187, %s188
      %p199 = scmp.eq.s32.totalorder %s24, 0
      %p200 = por %p198, %p199
      %p201 = scmp.ne.s32.totalorder %s187, %s188
      %p202 = scmp.eq.s32.totalorder %s25, 1
      %p203 = por %p201, %p202
      %p205 = scmp.ne.s32.totalorder %s188, %s204
      %p206 = scmp.eq.s32.totalorder %s25, 0
      %p207 = por %p205, %p206
      %p208 = scmp.le.s32.totalorder 1, %s19
      %p209 = scmp.lt.s32.totalorder %s19, 3
      %p210 = pnand %p208, %p209
      %p211 = pneg %p210
      // Predicated region
      $region9: #{tpu_custom_call.1} parent=5 // pred_check
        _
      $region10: #{tpu_custom_call.1} parent=5 // pred_check_branch
        %213 = sbr.rel (%p210) target = $region12
      $region11: #{tpu_custom_call.1} parent=5 // pred_region
        %s214 = ssub.s32 %s19, 1
        // Predicated region
        $region13: #{tpu_custom_call.1} parent=11 // pred_check
          %p215 = pneg %p66
        $region14: #{tpu_custom_call.1} parent=11 // pred_check_branch
          %217 = sbr.rel (%p215) target = $region16
        $region15: #{tpu_custom_call.1} parent=11 // pred_region
          %s218 = smul.u32 32, %s29
          %s219 = smul.u32 2, %s31
          %s221 = ssub.s32 4096, 4096
          %222 = vsyncadd [#allocation4], %s221
          %s223 = smul.addr %s218, 2
          %s224 = sadd.s32 %s219, %s223
          %s225 = smul.addr %s224, 64
          %s226 = scalar_lea.hbm %s0, %s225
          %s227 = sshll.u32 [#allocation3], 4
          %s228 = int_to_ptr.vmem [resolvable:$true] %s227
          %233 = dma.hbm_to_vmem [thread:$0]  %s226, 4096, %s228, [#allocation4], 128, 128, 8
        $region16: #{tpu_custom_call.1} parent=11 // pred_fallthru
          _
        // Predicated region
        $region17: #{tpu_custom_call.1} parent=11 // pred_check
          %p234 = pneg %p146
        $region18: #{tpu_custom_call.1} parent=11 // pred_check_branch
          %236 = sbr.rel (%p234) target = $region20
        $region19: #{tpu_custom_call.1} parent=11 // pred_region
          %s237 = smul.u32 32, %s29
          %s239 = ssub.s32 4096, 4096
          %240 = vsyncadd [#allocation7], %s239
          %s241 = smul.addr %s237, 128
          %s242 = scalar_lea.hbm %s3, %s241
          %s243 = sshll.u32 [#allocation8], 4
          %s244 = int_to_ptr.vmem [resolvable:$true] %s243
          %249 = dma.hbm_to_vmem [thread:$0]  %s242, 4096, %s244, [#allocation7], 128, 128, 8
        $region20: #{tpu_custom_call.1} parent=11 // pred_fallthru
          _
        // Predicated region
        $region21: #{tpu_custom_call.1} parent=11 // pred_check
          %p250 = pneg %p172
        $region22: #{tpu_custom_call.1} parent=11 // pred_check_branch
          %252 = sbr.rel (%p250) target = $region24
        $region23: #{tpu_custom_call.1} parent=11 // pred_region
          %s253 = smul.u32 32, %s29
          %s255 = ssub.s32 4096, 4096
          %256 = vsyncadd [#allocation10], %s255
          %s257 = smul.addr %s253, 128
          %s258 = scalar_lea.hbm %s4, %s257
          %s259 = sshll.u32 [#allocation9], 4
          %s260 = int_to_ptr.vmem [resolvable:$true] %s259
          %265 = dma.hbm_to_vmem [thread:$0]  %s258, 4096, %s260, [#allocation10], 128, 128, 8
        $region24: #{tpu_custom_call.1} parent=11 // pred_fallthru
          _
      $region12: #{tpu_custom_call.1} parent=5 // pred_fallthru
        _
      %p266 = scmp.lt.s32.totalorder %s19, 2
      // Predicated region
      $region25: #{tpu_custom_call.1} parent=5 // pred_check
        %p267 = pneg %p266
      $region26: #{tpu_custom_call.1} parent=5 // pred_check_branch
        %269 = sbr.rel (%p267) target = $region28
      $region27: #{tpu_custom_call.1} parent=5 // pred_region
        // Predicated region
        $region29: #{tpu_custom_call.1} parent=27 // pred_check
          %p270 = pneg %p88
        $region30: #{tpu_custom_call.1} parent=27 // pred_check_branch
          %272 = sbr.rel (%p270) target = $region32
        $region31: #{tpu_custom_call.1} parent=27 // pred_region
          %s273 = sand.u32 %s19, 1
          %s274 = scalar_lea.sflag [#allocation7], %s273
          %s275 = sand.u32 %s78, 1
          %s276 = smul.addr %s275, 256
          %s277 = scalar_lea.vmem [#allocation6], %s276
          %s278 = smul.u32 32, %s28
          %s279 = smul.u32 2, %s27
          %s281 = ssub.s32 4096, 4096
          %282 = vsyncadd %s274, %s281
          %s283 = smul.addr %s278, 4
          %s284 = sadd.s32 %s279, %s283
          %s285 = smul.addr %s284, 64
          %s286 = scalar_lea.hbm %s1, %s285
          %s287 = sshll.u32 %s277, 4
          %s288 = int_to_ptr.vmem [resolvable:$true] %s287
          %293 = dma.hbm_to_vmem [thread:$0]  %s286, 4096, %s288, %s274, 256, 128, 8
        $region32: #{tpu_custom_call.1} parent=27 // pred_fallthru
          _
        // Predicated region
        $region33: #{tpu_custom_call.1} parent=27 // pred_check
          %p294 = pneg %p114
        $region34: #{tpu_custom_call.1} parent=27 // pred_check_branch
          %296 = sbr.rel (%p294) target = $region36
        $region35: #{tpu_custom_call.1} parent=27 // pred_region
          %s297 = smul.u32 2, %s27
          %p298 = scmp.lt.s32.totalorder %s297, 3
          %s299 = scalar_select %p298, %s297, 3
          %s300 = scalar_lea.vmem %s2, %s299
          %s301 = smul.u32 2, %s27
        $region36: #{tpu_custom_call.1} parent=27 // pred_fallthru
          _
      $region28: #{tpu_custom_call.1} parent=5 // pred_fallthru
        _
      %p302 = scmp.le.s32.totalorder 1, %s19
      %p303 = scmp.lt.s32.totalorder %s19, 3
      %p304 = pnand %p302, %p303
      %p305 = pneg %p304
      // Predicated region
      $region37: #{tpu_custom_call.1} parent=5 // pred_check
        _
      $region38: #{tpu_custom_call.1} parent=5 // pred_check_branch
        %307 = sbr.rel (%p304) target = $region40
      $region39: #{tpu_custom_call.1} parent=5 // pred_region
        %s308 = ssub.s32 %s19, 1
        // Predicated region
        $region41: #{tpu_custom_call.1} parent=39 // pred_check
          %p309 = pneg %p66
        $region42: #{tpu_custom_call.1} parent=39 // pred_check_branch
          %311 = sbr.rel (%p309) target = $region44
        $region43: #{tpu_custom_call.1} parent=39 // pred_region
          %312 = dma.done [#allocation4], 4096
        $region44: #{tpu_custom_call.1} parent=39 // pred_fallthru
          _
        %s313 = sand.u32 %s24, 1
        %s314 = scalar_lea.sflag [#allocation7], %s313
        %s315 = sand.u32 %s81, 1
        %s316 = smul.addr %s315, 256
        %s317 = scalar_lea.vmem [#allocation6], %s316
        // Predicated region
        $region45: #{tpu_custom_call.1} parent=39 // pred_check
          %p318 = pneg %p94
        $region46: #{tpu_custom_call.1} parent=39 // pred_check_branch
          %320 = sbr.rel (%p318) target = $region48
        $region47: #{tpu_custom_call.1} parent=39 // pred_region
          %321 = dma.done %s314, 4096
        $region48: #{tpu_custom_call.1} parent=39 // pred_fallthru
          _
        // Predicated region
        $region49: #{tpu_custom_call.1} parent=39 // pred_check
          %p322 = pneg %p146
        $region50: #{tpu_custom_call.1} parent=39 // pred_check_branch
          %324 = sbr.rel (%p322) target = $region52
        $region51: #{tpu_custom_call.1} parent=39 // pred_region
          %325 = dma.done [#allocation7], 4096
        $region52: #{tpu_custom_call.1} parent=39 // pred_fallthru
          _
        // Predicated region
        $region53: #{tpu_custom_call.1} parent=39 // pred_check
          %p326 = pneg %p172
        $region54: #{tpu_custom_call.1} parent=39 // pred_check_branch
          %328 = sbr.rel (%p326) target = $region56
        $region55: #{tpu_custom_call.1} parent=39 // pred_region
          %329 = dma.done [#allocation10], 4096
        $region56: #{tpu_custom_call.1} parent=39 // pred_fallthru
          _
        %p330 = pneg %p66
        %p331 = pneg %p63
        %s332 = sand.u32 %s24, 1
        %s333 = scalar_lea.sflag [#allocation7], %s332
        %s334 = sand.u32 %s81, 1
        %s335 = smul.addr %s334, 256
        %s336 = scalar_lea.vmem [#allocation6], %s335
        %p337 = pneg %p94
        %p338 = pneg %p91
        %s339 = smul.u32 2, %s30
        %p340 = scmp.lt.s32.totalorder %s339, 3
        %s341 = scalar_select %p340, %s339, 3
        %s342 = scalar_lea.vmem %s2, %s341
        %p343 = pneg %p120
        %p344 = pneg %p117
        %p345 = pneg %p146
        %p346 = pneg %p143
        %p347 = pneg %p172
        %p348 = pneg %p169
        %p349 = pneg %p200
        %p350 = pneg %p197
        %s351 = sand.u32 %s187, 1
        %s352 = scalar_lea.sflag [#allocation5], %s351
        %s353 = sand.u32 %s187, 1
        %s354 = smul.addr %s353, 256
        %s355 = scalar_lea.vmem [#allocation11], %s354
        %s356 = smul.u32 32, %s29
        %s357 = smul.u32 2, %s31
        %s358 = smul.u32 32, %s31
        %s359 = smul.u32 2, %s30
        %s360 = smul.u32 2, %s30
        %p361 = scmp.lt.s32.totalorder %s360, 3
        %s362 = scalar_select %p361, %s360, 3
        %s363 = scalar_lea.vmem %s2, %s362
        %s364 = smul.u32 2, %s30
        %s365 = smul.u32 32, %s29
        %s366 = smul.u32 32, %s29
        %s367 = smul.u32 32, %s29
        %s368 = smul.u32 2, %s30
        %p369 = scmp.eq.s32.totalorder %s31, 0
        // Predicated region
        $region57: #{tpu_custom_call.1} parent=39 // pred_check
          %p370 = pneg %p369
        $region58: #{tpu_custom_call.1} parent=39 // pred_check_branch
          %372 = sbr.rel (%p370) target = $region60
        $region59: #{tpu_custom_call.1} parent=39 // pred_region
          %373 = vst [vmem:[#allocation2] sm:$0xff] 0.0
          %374 = vst [vmem:[#allocation2 + $0x8] sm:$0xff] 0.0
          %375 = vst [vmem:[#allocation2 + $0x10] sm:$0xff] 0.0
          %376 = vst [vmem:[#allocation2 + $0x18] sm:$0xff] 0.0
          %377 = vst [vmem:[#allocation2 + $0x20] sm:$0xff] 0.0
          %378 = vst [vmem:[#allocation2 + $0x28] sm:$0xff] 0.0
          %379 = vst [vmem:[#allocation2 + $0x30] sm:$0xff] 0.0
          %380 = vst [vmem:[#allocation2 + $0x38] sm:$0xff] 0.0
          %381 = vst [vmem:[#allocation2 + $0x40] sm:$0xff] 0.0
          %382 = vst [vmem:[#allocation2 + $0x48] sm:$0xff] 0.0
          %383 = vst [vmem:[#allocation2 + $0x50] sm:$0xff] 0.0
          %384 = vst [vmem:[#allocation2 + $0x58] sm:$0xff] 0.0
          %385 = vst [vmem:[#allocation2 + $0x60] sm:$0xff] 0.0
          %386 = vst [vmem:[#allocation2 + $0x68] sm:$0xff] 0.0
          %387 = vst [vmem:[#allocation2 + $0x70] sm:$0xff] 0.0
          %388 = vst [vmem:[#allocation2 + $0x78] sm:$0xff] 0.0
          %389 = vst [vmem:[#allocation2 + $0x80] sm:$0xff] 0.0
          %390 = vst [vmem:[#allocation2 + $0x88] sm:$0xff] 0.0
          %391 = vst [vmem:[#allocation2 + $0x90] sm:$0xff] 0.0
          %392 = vst [vmem:[#allocation2 + $0x98] sm:$0xff] 0.0
          %393 = vst [vmem:[#allocation2 + $0xa0] sm:$0xff] 0.0
          %394 = vst [vmem:[#allocation2 + $0xa8] sm:$0xff] 0.0
          %395 = vst [vmem:[#allocation2 + $0xb0] sm:$0xff] 0.0
          %396 = vst [vmem:[#allocation2 + $0xb8] sm:$0xff] 0.0
          %397 = vst [vmem:[#allocation2 + $0xc0] sm:$0xff] 0.0
          %398 = vst [vmem:[#allocation2 + $0xc8] sm:$0xff] 0.0
          %399 = vst [vmem:[#allocation2 + $0xd0] sm:$0xff] 0.0
          %400 = vst [vmem:[#allocation2 + $0xd8] sm:$0xff] 0.0
          %401 = vst [vmem:[#allocation2 + $0xe0] sm:$0xff] 0.0
          %402 = vst [vmem:[#allocation2 + $0xe8] sm:$0xff] 0.0
          %403 = vst [vmem:[#allocation2 + $0xf0] sm:$0xff] 0.0
          %404 = vst [vmem:[#allocation2 + $0xf8] sm:$0xff] 0.0
          %405 = vst [vmem:[#allocation2 + $0x100] sm:$0xff] 0.0
          %406 = vst [vmem:[#allocation2 + $0x108] sm:$0xff] 0.0
          %407 = vst [vmem:[#allocation2 + $0x110] sm:$0xff] 0.0
          %408 = vst [vmem:[#allocation2 + $0x118] sm:$0xff] 0.0
          %409 = vst [vmem:[#allocation2 + $0x120] sm:$0xff] 0.0
          %410 = vst [vmem:[#allocation2 + $0x128] sm:$0xff] 0.0
          %411 = vst [vmem:[#allocation2 + $0x130] sm:$0xff] 0.0
          %412 = vst [vmem:[#allocation2 + $0x138] sm:$0xff] 0.0
          %413 = vst [vmem:[#allocation2 + $0x140] sm:$0xff] 0.0
          %414 = vst [vmem:[#allocation2 + $0x148] sm:$0xff] 0.0
          %415 = vst [vmem:[#allocation2 + $0x150] sm:$0xff] 0.0
          %416 = vst [vmem:[#allocation2 + $0x158] sm:$0xff] 0.0
          %417 = vst [vmem:[#allocation2 + $0x160] sm:$0xff] 0.0
          %418 = vst [vmem:[#allocation2 + $0x168] sm:$0xff] 0.0
          %419 = vst [vmem:[#allocation2 + $0x170] sm:$0xff] 0.0
          %420 = vst [vmem:[#allocation2 + $0x178] sm:$0xff] 0.0
          %421 = vst [vmem:[#allocation2 + $0x180] sm:$0xff] 0.0
          %422 = vst [vmem:[#allocation2 + $0x188] sm:$0xff] 0.0
          %423 = vst [vmem:[#allocation2 + $0x190] sm:$0xff] 0.0
          %424 = vst [vmem:[#allocation2 + $0x198] sm:$0xff] 0.0
          %425 = vst [vmem:[#allocation2 + $0x1a0] sm:$0xff] 0.0
          %426 = vst [vmem:[#allocation2 + $0x1a8] sm:$0xff] 0.0
          %427 = vst [vmem:[#allocation2 + $0x1b0] sm:$0xff] 0.0
          %428 = vst [vmem:[#allocation2 + $0x1b8] sm:$0xff] 0.0
          %429 = vst [vmem:[#allocation2 + $0x1c0] sm:$0xff] 0.0
          %430 = vst [vmem:[#allocation2 + $0x1c8] sm:$0xff] 0.0
          %431 = vst [vmem:[#allocation2 + $0x1d0] sm:$0xff] 0.0
          %432 = vst [vmem:[#allocation2 + $0x1d8] sm:$0xff] 0.0
          %433 = vst [vmem:[#allocation2 + $0x1e0] sm:$0xff] 0.0
          %434 = vst [vmem:[#allocation2 + $0x1e8] sm:$0xff] 0.0
          %435 = vst [vmem:[#allocation2 + $0x1f0] sm:$0xff] 0.0
          %436 = vst [vmem:[#allocation2 + $0x1f8] sm:$0xff] 0.0
        $region60: #{tpu_custom_call.1} parent=39 // pred_fallthru
          _
        %v437 = vld [vmem:[#allocation2] sm:$0xff]
        %v438 = vld [vmem:[#allocation2 + $0x8] sm:$0xff]
        %v439 = vld [vmem:[#allocation2 + $0x10] sm:$0xff]
        %v440 = vld [vmem:[#allocation2 + $0x18] sm:$0xff]
        %v441 = vld [vmem:[#allocation2 + $0x20] sm:$0xff]
        %v442 = vld [vmem:[#allocation2 + $0x28] sm:$0xff]
        %v443 = vld [vmem:[#allocation2 + $0x30] sm:$0xff]
        %v444 = vld [vmem:[#allocation2 + $0x38] sm:$0xff]
        %v445 = vld [vmem:[#allocation2 + $0x40] sm:$0xff]
        %v446 = vld [vmem:[#allocation2 + $0x48] sm:$0xff]
        %v447 = vld [vmem:[#allocation2 + $0x50] sm:$0xff]
        %v448 = vld [vmem:[#allocation2 + $0x58] sm:$0xff]
        %v449 = vld [vmem:[#allocation2 + $0x60] sm:$0xff]
        %v450 = vld [vmem:[#allocation2 + $0x68] sm:$0xff]
        %v451 = vld [vmem:[#allocation2 + $0x70] sm:$0xff]
        %v452 = vld [vmem:[#allocation2 + $0x78] sm:$0xff]
        %v453 = vld [vmem:[#allocation2 + $0x80] sm:$0xff]
        %v454 = vld [vmem:[#allocation2 + $0x88] sm:$0xff]
        %v455 = vld [vmem:[#allocation2 + $0x90] sm:$0xff]
        %v456 = vld [vmem:[#allocation2 + $0x98] sm:$0xff]
        %v457 = vld [vmem:[#allocation2 + $0xa0] sm:$0xff]
        %v458 = vld [vmem:[#allocation2 + $0xa8] sm:$0xff]
        %v459 = vld [vmem:[#allocation2 + $0xb0] sm:$0xff]
        %v460 = vld [vmem:[#allocation2 + $0xb8] sm:$0xff]
        %v461 = vld [vmem:[#allocation2 + $0xc0] sm:$0xff]
        %v462 = vld [vmem:[#allocation2 + $0xc8] sm:$0xff]
        %v463 = vld [vmem:[#allocation2 + $0xd0] sm:$0xff]
        %v464 = vld [vmem:[#allocation2 + $0xd8] sm:$0xff]
        %v465 = vld [vmem:[#allocation2 + $0xe0] sm:$0xff]
        %v466 = vld [vmem:[#allocation2 + $0xe8] sm:$0xff]
        %v467 = vld [vmem:[#allocation2 + $0xf0] sm:$0xff]
        %v468 = vld [vmem:[#allocation2 + $0xf8] sm:$0xff]
        %v469 = vld [vmem:[#allocation2 + $0x100] sm:$0xff]
        %v470 = vld [vmem:[#allocation2 + $0x108] sm:$0xff]
        %v471 = vld [vmem:[#allocation2 + $0x110] sm:$0xff]
        %v472 = vld [vmem:[#allocation2 + $0x118] sm:$0xff]
        %v473 = vld [vmem:[#allocation2 + $0x120] sm:$0xff]
        %v474 = vld [vmem:[#allocation2 + $0x128] sm:$0xff]
        %v475 = vld [vmem:[#allocation2 + $0x130] sm:$0xff]
        %v476 = vld [vmem:[#allocation2 + $0x138] sm:$0xff]
        %v477 = vld [vmem:[#allocation2 + $0x140] sm:$0xff]
        %v478 = vld [vmem:[#allocation2 + $0x148] sm:$0xff]
        %v479 = vld [vmem:[#allocation2 + $0x150] sm:$0xff]
        %v480 = vld [vmem:[#allocation2 + $0x158] sm:$0xff]
        %v481 = vld [vmem:[#allocation2 + $0x160] sm:$0xff]
        %v482 = vld [vmem:[#allocation2 + $0x168] sm:$0xff]
        %v483 = vld [vmem:[#allocation2 + $0x170] sm:$0xff]
        %v484 = vld [vmem:[#allocation2 + $0x178] sm:$0xff]
        %v485 = vld [vmem:[#allocation2 + $0x180] sm:$0xff]
        %v486 = vld [vmem:[#allocation2 + $0x188] sm:$0xff]
        %v487 = vld [vmem:[#allocation2 + $0x190] sm:$0xff]
        %v488 = vld [vmem:[#allocation2 + $0x198] sm:$0xff]
        %v489 = vld [vmem:[#allocation2 + $0x1a0] sm:$0xff]
        %v490 = vld [vmem:[#allocation2 + $0x1a8] sm:$0xff]
        %v491 = vld [vmem:[#allocation2 + $0x1b0] sm:$0xff]
        %v492 = vld [vmem:[#allocation2 + $0x1b8] sm:$0xff]
        %v493 = vld [vmem:[#allocation2 + $0x1c0] sm:$0xff]
        %v494 = vld [vmem:[#allocation2 + $0x1c8] sm:$0xff]
        %v495 = vld [vmem:[#allocation2 + $0x1d0] sm:$0xff]
        %v496 = vld [vmem:[#allocation2 + $0x1d8] sm:$0xff]
        %v497 = vld [vmem:[#allocation2 + $0x1e0] sm:$0xff]
        %v498 = vld [vmem:[#allocation2 + $0x1e8] sm:$0xff]
        %v499 = vld [vmem:[#allocation2 + $0x1f0] sm:$0xff]
        %v500 = vld [vmem:[#allocation2 + $0x1f8] sm:$0xff]
        %v501 = vld [vmem:[#allocation3] sm:$0xff]
        %v502 = vld [vmem:[#allocation3 + $0x8] sm:$0xff]
        %v503 = vld [vmem:[#allocation3 + $0x10] sm:$0xff]
        %v504 = vld [vmem:[#allocation3 + $0x18] sm:$0xff]
        %v505 = vld [vmem:[#allocation3 + $0x20] sm:$0xff]
        %v506 = vld [vmem:[#allocation3 + $0x28] sm:$0xff]
        %v507 = vld [vmem:[#allocation3 + $0x30] sm:$0xff]
        %v508 = vld [vmem:[#allocation3 + $0x38] sm:$0xff]
        %v509 = vld [vmem:[#allocation3 + $0x40] sm:$0xff]
        %v510 = vld [vmem:[#allocation3 + $0x48] sm:$0xff]
        %v511 = vld [vmem:[#allocation3 + $0x50] sm:$0xff]
        %v512 = vld [vmem:[#allocation3 + $0x58] sm:$0xff]
        %v513 = vld [vmem:[#allocation3 + $0x60] sm:$0xff]
        %v514 = vld [vmem:[#allocation3 + $0x68] sm:$0xff]
        %v515 = vld [vmem:[#allocation3 + $0x70] sm:$0xff]
        %v516 = vld [vmem:[#allocation3 + $0x78] sm:$0xff]
        %v517 = vld [vmem:[#allocation3 + $0x80] sm:$0xff]
        %v518 = vld [vmem:[#allocation3 + $0x88] sm:$0xff]
        %v519 = vld [vmem:[#allocation3 + $0x90] sm:$0xff]
        %v520 = vld [vmem:[#allocation3 + $0x98] sm:$0xff]
        %v521 = vld [vmem:[#allocation3 + $0xa0] sm:$0xff]
        %v522 = vld [vmem:[#allocation3 + $0xa8] sm:$0xff]
        %v523 = vld [vmem:[#allocation3 + $0xb0] sm:$0xff]
        %v524 = vld [vmem:[#allocation3 + $0xb8] sm:$0xff]
        %v525 = vld [vmem:[#allocation3 + $0xc0] sm:$0xff]
        %v526 = vld [vmem:[#allocation3 + $0xc8] sm:$0xff]
        %v527 = vld [vmem:[#allocation3 + $0xd0] sm:$0xff]
        %v528 = vld [vmem:[#allocation3 + $0xd8] sm:$0xff]
        %v529 = vld [vmem:[#allocation3 + $0xe0] sm:$0xff]
        %v530 = vld [vmem:[#allocation3 + $0xe8] sm:$0xff]
        %v531 = vld [vmem:[#allocation3 + $0xf0] sm:$0xff]
        %v532 = vld [vmem:[#allocation3 + $0xf8] sm:$0xff]
        %v533 = vld [vmem:[%s317] sm:$0xff]
        %v534 = vld [vmem:[%s317 + $0x8] sm:$0xff]
        %v535 = vld [vmem:[%s317 + $0x10] sm:$0xff]
        %v536 = vld [vmem:[%s317 + $0x18] sm:$0xff]
        %v537 = vld [vmem:[%s317 + $0x20] sm:$0xff]
        %v538 = vld [vmem:[%s317 + $0x28] sm:$0xff]
        %v539 = vld [vmem:[%s317 + $0x30] sm:$0xff]
        %v540 = vld [vmem:[%s317 + $0x38] sm:$0xff]
        %v541 = vld [vmem:[%s317 + $0x40] sm:$0xff]
        %v542 = vld [vmem:[%s317 + $0x48] sm:$0xff]
        %v543 = vld [vmem:[%s317 + $0x50] sm:$0xff]
        %v544 = vld [vmem:[%s317 + $0x58] sm:$0xff]
        %v545 = vld [vmem:[%s317 + $0x60] sm:$0xff]
        %v546 = vld [vmem:[%s317 + $0x68] sm:$0xff]
        %v547 = vld [vmem:[%s317 + $0x70] sm:$0xff]
        %v548 = vld [vmem:[%s317 + $0x78] sm:$0xff]
        %v549 = vld [vmem:[%s317 + $0x80] sm:$0xff]
        %v550 = vld [vmem:[%s317 + $0x88] sm:$0xff]
        %v551 = vld [vmem:[%s317 + $0x90] sm:$0xff]
        %v552 = vld [vmem:[%s317 + $0x98] sm:$0xff]
        %v553 = vld [vmem:[%s317 + $0xa0] sm:$0xff]
        %v554 = vld [vmem:[%s317 + $0xa8] sm:$0xff]
        %v555 = vld [vmem:[%s317 + $0xb0] sm:$0xff]
        %v556 = vld [vmem:[%s317 + $0xb8] sm:$0xff]
        %v557 = vld [vmem:[%s317 + $0xc0] sm:$0xff]
        %v558 = vld [vmem:[%s317 + $0xc8] sm:$0xff]
        %v559 = vld [vmem:[%s317 + $0xd0] sm:$0xff]
        %v560 = vld [vmem:[%s317 + $0xd8] sm:$0xff]
        %v561 = vld [vmem:[%s317 + $0xe0] sm:$0xff]
        %v562 = vld [vmem:[%s317 + $0xe8] sm:$0xff]
        %v563 = vld [vmem:[%s317 + $0xf0] sm:$0xff]
        %v564 = vld [vmem:[%s317 + $0xf8] sm:$0xff]
        %v597 = vunpack.c.l.b16 %v501
        %v598 = vunpack.c.h.b16 %v501
        %v599 = vunpack.c.l.b16 %v502
        %v600 = vunpack.c.h.b16 %v502
        %v601 = vunpack.c.l.b16 %v503
        %v602 = vunpack.c.h.b16 %v503
        %v603 = vunpack.c.l.b16 %v504
        %v604 = vunpack.c.h.b16 %v504
        %v605 = vunpack.c.l.b16 %v505
        %v606 = vunpack.c.h.b16 %v505
        %v607 = vunpack.c.l.b16 %v506
        %v608 = vunpack.c.h.b16 %v506
        %v609 = vunpack.c.l.b16 %v507
        %v610 = vunpack.c.h.b16 %v507
        %v611 = vunpack.c.l.b16 %v508
        %v612 = vunpack.c.h.b16 %v508
        %v613 = vunpack.c.l.b16 %v509
        %v614 = vunpack.c.h.b16 %v509
        %v615 = vunpack.c.l.b16 %v510
        %v616 = vunpack.c.h.b16 %v510
        %v617 = vunpack.c.l.b16 %v511
        %v618 = vunpack.c.h.b16 %v511
        %v619 = vunpack.c.l.b16 %v512
        %v620 = vunpack.c.h.b16 %v512
        %v621 = vunpack.c.l.b16 %v513
        %v622 = vunpack.c.h.b16 %v513
        %v623 = vunpack.c.l.b16 %v514
        %v624 = vunpack.c.h.b16 %v514
        %v625 = vunpack.c.l.b16 %v515
        %v626 = vunpack.c.h.b16 %v515
        %v627 = vunpack.c.l.b16 %v516
        %v628 = vunpack.c.h.b16 %v516
        %v629 = vunpack.c.l.b16 %v517
        %v630 = vunpack.c.h.b16 %v517
        %v631 = vunpack.c.l.b16 %v518
        %v632 = vunpack.c.h.b16 %v518
        %v633 = vunpack.c.l.b16 %v519
        %v634 = vunpack.c.h.b16 %v519
        %v635 = vunpack.c.l.b16 %v520
        %v636 = vunpack.c.h.b16 %v520
        %v637 = vunpack.c.l.b16 %v521
        %v638 = vunpack.c.h.b16 %v521
        %v639 = vunpack.c.l.b16 %v522
        %v640 = vunpack.c.h.b16 %v522
        %v641 = vunpack.c.l.b16 %v523
        %v642 = vunpack.c.h.b16 %v523
        %v643 = vunpack.c.l.b16 %v524
        %v644 = vunpack.c.h.b16 %v524
        %v645 = vunpack.c.l.b16 %v525
        %v646 = vunpack.c.h.b16 %v525
        %v647 = vunpack.c.l.b16 %v526
        %v648 = vunpack.c.h.b16 %v526
        %v649 = vunpack.c.l.b16 %v527
        %v650 = vunpack.c.h.b16 %v527
        %v651 = vunpack.c.l.b16 %v528
        %v652 = vunpack.c.h.b16 %v528
        %v653 = vunpack.c.l.b16 %v529
        %v654 = vunpack.c.h.b16 %v529
        %v655 = vunpack.c.l.b16 %v530
        %v656 = vunpack.c.h.b16 %v530
        %v657 = vunpack.c.l.b16 %v531
        %v658 = vunpack.c.h.b16 %v531
        %v659 = vunpack.c.l.b16 %v532
        %v660 = vunpack.c.h.b16 %v532
        %v661 = vpack.c.b16 %v599, %v597
        %v662 = vpack.c.b16 %v600, %v598
        %v663 = vpack.c.b16 %v603, %v601
        %v664 = vpack.c.b16 %v604, %v602
        %v665 = vpack.c.b16 %v607, %v605
        %v666 = vpack.c.b16 %v608, %v606
        %v667 = vpack.c.b16 %v611, %v609
        %v668 = vpack.c.b16 %v612, %v610
        %v669 = vpack.c.b16 %v615, %v613
        %v670 = vpack.c.b16 %v616, %v614
        %v671 = vpack.c.b16 %v619, %v617
        %v672 = vpack.c.b16 %v620, %v618
        %v673 = vpack.c.b16 %v623, %v621
        %v674 = vpack.c.b16 %v624, %v622
        %v675 = vpack.c.b16 %v627, %v625
        %v676 = vpack.c.b16 %v628, %v626
        %v677 = vpack.c.b16 %v631, %v629
        %v678 = vpack.c.b16 %v632, %v630
        %v679 = vpack.c.b16 %v635, %v633
        %v680 = vpack.c.b16 %v636, %v634
        %v681 = vpack.c.b16 %v639, %v637
        %v682 = vpack.c.b16 %v640, %v638
        %v683 = vpack.c.b16 %v643, %v641
        %v684 = vpack.c.b16 %v644, %v642
        %v685 = vpack.c.b16 %v647, %v645
        %v686 = vpack.c.b16 %v648, %v646
        %v687 = vpack.c.b16 %v651, %v649
        %v688 = vpack.c.b16 %v652, %v650
        %v689 = vpack.c.b16 %v655, %v653
        %v690 = vpack.c.b16 %v656, %v654
        %v691 = vpack.c.b16 %v659, %v657
        %v692 = vpack.c.b16 %v660, %v658
        %v757 = vunpack.c.l.b16 %v533
        %v758 = vunpack.c.h.b16 %v533
        %v759 = vunpack.c.l.b16 %v534
        %v760 = vunpack.c.h.b16 %v534
        %v761 = vunpack.c.l.b16 %v535
        %v762 = vunpack.c.h.b16 %v535
        %v763 = vunpack.c.l.b16 %v536
        %v764 = vunpack.c.h.b16 %v536
        %v765 = vunpack.c.l.b16 %v537
        %v766 = vunpack.c.h.b16 %v537
        %v767 = vunpack.c.l.b16 %v538
        %v768 = vunpack.c.h.b16 %v538
        %v769 = vunpack.c.l.b16 %v539
        %v770 = vunpack.c.h.b16 %v539
        %v771 = vunpack.c.l.b16 %v540
        %v772 = vunpack.c.h.b16 %v540
        %v773 = vunpack.c.l.b16 %v541
        %v774 = vunpack.c.h.b16 %v541
        %v775 = vunpack.c.l.b16 %v542
        %v776 = vunpack.c.h.b16 %v542
        %v777 = vunpack.c.l.b16 %v543
        %v778 = vunpack.c.h.b16 %v543
        %v779 = vunpack.c.l.b16 %v544
        %v780 = vunpack.c.h.b16 %v544
        %v781 = vunpack.c.l.b16 %v545
        %v782 = vunpack.c.h.b16 %v545
        %v783 = vunpack.c.l.b16 %v546
        %v784 = vunpack.c.h.b16 %v546
        %v785 = vunpack.c.l.b16 %v547
        %v786 = vunpack.c.h.b16 %v547
        %v787 = vunpack.c.l.b16 %v548
        %v788 = vunpack.c.h.b16 %v548
        %v789 = vunpack.c.l.b16 %v549
        %v790 = vunpack.c.h.b16 %v549
        %v791 = vunpack.c.l.b16 %v550
        %v792 = vunpack.c.h.b16 %v550
        %v793 = vunpack.c.l.b16 %v551
        %v794 = vunpack.c.h.b16 %v551
        %v795 = vunpack.c.l.b16 %v552
        %v796 = vunpack.c.h.b16 %v552
        %v797 = vunpack.c.l.b16 %v553
        %v798 = vunpack.c.h.b16 %v553
        %v799 = vunpack.c.l.b16 %v554
        %v800 = vunpack.c.h.b16 %v554
        %v801 = vunpack.c.l.b16 %v555
        %v802 = vunpack.c.h.b16 %v555
        %v803 = vunpack.c.l.b16 %v556
        %v804 = vunpack.c.h.b16 %v556
        %v805 = vunpack.c.l.b16 %v557
        %v806 = vunpack.c.h.b16 %v557
        %v807 = vunpack.c.l.b16 %v558
        %v808 = vunpack.c.h.b16 %v558
        %v809 = vunpack.c.l.b16 %v559
        %v810 = vunpack.c.h.b16 %v559
        %v811 = vunpack.c.l.b16 %v560
        %v812 = vunpack.c.h.b16 %v560
        %v813 = vunpack.c.l.b16 %v561
        %v814 = vunpack.c.h.b16 %v561
        %v815 = vunpack.c.l.b16 %v562
        %v816 = vunpack.c.h.b16 %v562
        %v817 = vunpack.c.l.b16 %v563
        %v818 = vunpack.c.h.b16 %v563
        %v819 = vunpack.c.l.b16 %v564
        %v820 = vunpack.c.h.b16 %v564
        %v821 = vpack.c.b16 %v759, %v757
        %v822 = vpack.c.b16 %v760, %v758
        %v823 = vpack.c.b16 %v763, %v761
        %v824 = vpack.c.b16 %v764, %v762
        %v825 = vpack.c.b16 %v767, %v765
        %v826 = vpack.c.b16 %v768, %v766
        %v827 = vpack.c.b16 %v771, %v769
        %v828 = vpack.c.b16 %v772, %v770
        %v829 = vpack.c.b16 %v775, %v773
        %v830 = vpack.c.b16 %v776, %v774
        %v831 = vpack.c.b16 %v779, %v777
        %v832 = vpack.c.b16 %v780, %v778
        %v833 = vpack.c.b16 %v783, %v781
        %v834 = vpack.c.b16 %v784, %v782
        %v835 = vpack.c.b16 %v787, %v785
        %v836 = vpack.c.b16 %v788, %v786
        %v837 = vpack.c.b16 %v791, %v789
        %v838 = vpack.c.b16 %v792, %v790
        %v839 = vpack.c.b16 %v795, %v793
        %v840 = vpack.c.b16 %v796, %v794
        %v841 = vpack.c.b16 %v799, %v797
        %v842 = vpack.c.b16 %v800, %v798
        %v843 = vpack.c.b16 %v803, %v801
        %v844 = vpack.c.b16 %v804, %v802
        %v845 = vpack.c.b16 %v807, %v805
        %v846 = vpack.c.b16 %v808, %v806
        %v847 = vpack.c.b16 %v811, %v809
        %v848 = vpack.c.b16 %v812, %v810
        %v849 = vpack.c.b16 %v815, %v813
        %v850 = vpack.c.b16 %v816, %v814
        %v851 = vpack.c.b16 %v819, %v817
        %v852 = vpack.c.b16 %v820, %v818
        %885 = vmatprep.subr.bf16.mxu0 %v822
        %886 = vmatpush1.bf16.msra.mxu0 %v821
        %887 = vmatprep.subr.bf16.mxu0 %v824
        %888 = vmatpush1.bf16.msra.mxu0 %v823
        %889 = vmatprep.subr.bf16.mxu0 %v826
        %890 = vmatpush1.bf16.msra.mxu0 %v825
        %891 = vmatprep.subr.bf16.mxu0 %v828
        %892 = vmatpush1.bf16.msra.mxu0 %v827
        %893 = vmatprep.subr.bf16.mxu0 %v830
        %894 = vmatpush1.bf16.msra.mxu0 %v829
        %895 = vmatprep.subr.bf16.mxu0 %v832
        %896 = vmatpush1.bf16.msra.mxu0 %v831
        %897 = vmatprep.subr.bf16.mxu0 %v834
        %898 = vmatpush1.bf16.msra.mxu0 %v833
        %899 = vmatprep.subr.bf16.mxu0 %v836
        %900 = vmatpush1.bf16.msra.mxu0 %v835
        %901 = vmatprep.subr.bf16.mxu0 %v838
        %902 = vmatpush1.bf16.msra.mxu0 %v837
        %903 = vmatprep.subr.bf16.mxu0 %v840
        %904 = vmatpush1.bf16.msra.mxu0 %v839
        %905 = vmatprep.subr.bf16.mxu0 %v842
        %906 = vmatpush1.bf16.msra.mxu0 %v841
        %907 = vmatprep.subr.bf16.mxu0 %v844
        %908 = vmatpush1.bf16.msra.mxu0 %v843
        %909 = vmatprep.subr.bf16.mxu0 %v846
        %910 = vmatpush1.bf16.msra.mxu0 %v845
        %911 = vmatprep.subr.bf16.mxu0 %v848
        %912 = vmatpush1.bf16.msra.mxu0 %v847
        %913 = vmatprep.subr.bf16.mxu0 %v850
        %914 = vmatpush1.bf16.msra.mxu0 %v849
        %915 = vmatprep.subr.bf16.mxu0 %v852
        %916 = vmatpush1.bf16.msra.mxu0 %v851
        %917 = vmatprep.mubr.bf16.mxu0 %v662
        %918 = vmatmul.mubr.bf16.gmra.mrb[0].mxu0 %v661
        %v919 = vpop.f32.mrb[0].mxu0
        %v920 = vadd.f32 0.0, %v919
        %v921 = vpop.f32.mrb[0].mxu0
        %v922 = vadd.f32 0.0, %v921
        %v923 = vpop.f32.mrb[0].mxu0
        %v924 = vadd.f32 0.0, %v923
        %v925 = vpop.f32.mrb[0].mxu0
        %v926 = vadd.f32 0.0, %v925
        %927 = vmatprep.mubr.bf16.mxu0 %v664
        %928 = vmatmul.mubr.bf16.gmra.mrb[0].mxu0 %v663
        %v929 = vpop.f32.mrb[0].mxu0
        %v930 = vadd.f32 0.0, %v929
        %v931 = vpop.f32.mrb[0].mxu0
        %v932 = vadd.f32 0.0, %v931
        %v933 = vpop.f32.mrb[0].mxu0
        %v934 = vadd.f32 0.0, %v933
        %v935 = vpop.f32.mrb[0].mxu0
        %v936 = vadd.f32 0.0, %v935
        %937 = vmatprep.mubr.bf16.mxu0 %v666
        %938 = vmatmul.mubr.bf16.gmra.mrb[0].mxu0 %v665
        %v939 = vpop.f32.mrb[0].mxu0
        %v940 = vadd.f32 0.0, %v939
        %v941 = vpop.f32.mrb[0].mxu0
        %v942 = vadd.f32 0.0, %v941
        %v943 = vpop.f32.mrb[0].mxu0
        %v944 = vadd.f32 0.0, %v943
        %v945 = vpop.f32.mrb[0].mxu0
        %v946 = vadd.f32 0.0, %v945
        %947 = vmatprep.mubr.bf16.mxu0 %v668
        %948 = vmatmul.mubr.bf16.gmra.mrb[0].mxu0 %v667
        %v949 = vpop.f32.mrb[0].mxu0
        %v950 = vadd.f32 0.0, %v949
        %v951 = vpop.f32.mrb[0].mxu0
        %v952 = vadd.f32 0.0, %v951
        %v953 = vpop.f32.mrb[0].mxu0
        %v954 = vadd.f32 0.0, %v953
        %v955 = vpop.f32.mrb[0].mxu0
        %v956 = vadd.f32 0.0, %v955
        %957 = vmatprep.mubr.bf16.mxu0 %v670
        %958 = vmatmul.mubr.bf16.gmra.mrb[0].mxu0 %v669
        %v959 = vpop.f32.mrb[0].mxu0
        %v960 = vadd.f32 0.0, %v959
        %v961 = vpop.f32.mrb[0].mxu0
        %v962 = vadd.f32 0.0, %v961
        %v963 = vpop.f32.mrb[0].mxu0
        %v964 = vadd.f32 0.0, %v963
        %v965 = vpop.f32.mrb[0].mxu0
        %v966 = vadd.f32 0.0, %v965
        %967 = vmatprep.mubr.bf16.mxu0 %v672
        %968 = vmatmul.mubr.bf16.gmra.mrb[0].mxu0 %v671
        %v969 = vpop.f32.mrb[0].mxu0
        %v970 = vadd.f32 0.0, %v969
        %v971 = vpop.f32.mrb[0].mxu0
        %v972 = vadd.f32 0.0, %v971
        %v973 = vpop.f32.mrb[0].mxu0
        %v974 = vadd.f32 0.0, %v973
        %v975 = vpop.f32.mrb[0].mxu0
        %v976 = vadd.f32 0.0, %v975
        %977 = vmatprep.mubr.bf16.mxu0 %v674
        %978 = vmatmul.mubr.bf16.gmra.mrb[0].mxu0 %v673
        %v979 = vpop.f32.mrb[0].mxu0
        %v980 = vadd.f32 0.0, %v979
        %v981 = vpop.f32.mrb[0].mxu0
        %v982 = vadd.f32 0.0, %v981
        %v983 = vpop.f32.mrb[0].mxu0
        %v984 = vadd.f32 0.0, %v983
        %v985 = vpop.f32.mrb[0].mxu0
        %v986 = vadd.f32 0.0, %v985
        %987 = vmatprep.mubr.bf16.mxu0 %v676
        %988 = vmatmul.mubr.bf16.gmra.mrb[0].mxu0 %v675
        %v989 = vpop.f32.mrb[0].mxu0
        %v990 = vadd.f32 0.0, %v989
        %v991 = vpop.f32.mrb[0].mxu0
        %v992 = vadd.f32 0.0, %v991
        %v993 = vpop.f32.mrb[0].mxu0
        %v994 = vadd.f32 0.0, %v993
        %v995 = vpop.f32.mrb[0].mxu0
        %v996 = vadd.f32 0.0, %v995
        %997 = vmatprep.mubr.bf16.mxu0 %v678
        %998 = vmatmul.mubr.bf16.gmra.mrb[0].mxu0 %v677
        %v999 = vpop.f32.mrb[0].mxu0
        %v1000 = vadd.f32 0.0, %v999
        %v1001 = vpop.f32.mrb[0].mxu0
        %v1002 = vadd.f32 0.0, %v1001
        %v1003 = vpop.f32.mrb[0].mxu0
        %v1004 = vadd.f32 0.0, %v1003
        %v1005 = vpop.f32.mrb[0].mxu0
        %v1006 = vadd.f32 0.0, %v1005
        %1007 = vmatprep.mubr.bf16.mxu0 %v680
        %1008 = vmatmul.mubr.bf16.gmra.mrb[0].mxu0 %v679
        %v1009 = vpop.f32.mrb[0].mxu0
        %v1010 = vadd.f32 0.0, %v1009
        %v1011 = vpop.f32.mrb[0].mxu0
        %v1012 = vadd.f32 0.0, %v1011
        %v1013 = vpop.f32.mrb[0].mxu0
        %v1014 = vadd.f32 0.0, %v1013
        %v1015 = vpop.f32.mrb[0].mxu0
        %v1016 = vadd.f32 0.0, %v1015
        %1017 = vmatprep.mubr.bf16.mxu0 %v682
        %1018 = vmatmul.mubr.bf16.gmra.mrb[0].mxu0 %v681
        %v1019 = vpop.f32.mrb[0].mxu0
        %v1020 = vadd.f32 0.0, %v1019
        %v1021 = vpop.f32.mrb[0].mxu0
        %v1022 = vadd.f32 0.0, %v1021
        %v1023 = vpop.f32.mrb[0].mxu0
        %v1024 = vadd.f32 0.0, %v1023
        %v1025 = vpop.f32.mrb[0].mxu0
        %v1026 = vadd.f32 0.0, %v1025
        %1027 = vmatprep.mubr.bf16.mxu0 %v684
        %1028 = vmatmul.mubr.bf16.gmra.mrb[0].mxu0 %v683
        %v1029 = vpop.f32.mrb[0].mxu0
        %v1030 = vadd.f32 0.0, %v1029
        %v1031 = vpop.f32.mrb[0].mxu0
        %v1032 = vadd.f32 0.0, %v1031
        %v1033 = vpop.f32.mrb[0].mxu0
        %v1034 = vadd.f32 0.0, %v1033
        %v1035 = vpop.f32.mrb[0].mxu0
        %v1036 = vadd.f32 0.0, %v1035
        %1037 = vmatprep.mubr.bf16.mxu0 %v686
        %1038 = vmatmul.mubr.bf16.gmra.mrb[0].mxu0 %v685
        %v1039 = vpop.f32.mrb[0].mxu0
        %v1040 = vadd.f32 0.0, %v1039
        %v1041 = vpop.f32.mrb[0].mxu0
        %v1042 = vadd.f32 0.0, %v1041
        %v1043 = vpop.f32.mrb[0].mxu0
        %v1044 = vadd.f32 0.0, %v1043
        %v1045 = vpop.f32.mrb[0].mxu0
        %v1046 = vadd.f32 0.0, %v1045
        %1047 = vmatprep.mubr.bf16.mxu0 %v688
        %1048 = vmatmul.mubr.bf16.gmra.mrb[0].mxu0 %v687
        %v1049 = vpop.f32.mrb[0].mxu0
        %v1050 = vadd.f32 0.0, %v1049
        %v1051 = vpop.f32.mrb[0].mxu0
        %v1052 = vadd.f32 0.0, %v1051
        %v1053 = vpop.f32.mrb[0].mxu0
        %v1054 = vadd.f32 0.0, %v1053
        %v1055 = vpop.f32.mrb[0].mxu0
        %v1056 = vadd.f32 0.0, %v1055
        %1057 = vmatprep.mubr.bf16.mxu0 %v690
        %1058 = vmatmul.mubr.bf16.gmra.mrb[0].mxu0 %v689
        %v1059 = vpop.f32.mrb[0].mxu0
        %v1060 = vadd.f32 0.0, %v1059
        %v1061 = vpop.f32.mrb[0].mxu0
        %v1062 = vadd.f32 0.0, %v1061
        %v1063 = vpop.f32.mrb[0].mxu0
        %v1064 = vadd.f32 0.0, %v1063
        %v1065 = vpop.f32.mrb[0].mxu0
        %v1066 = vadd.f32 0.0, %v1065
        %1067 = vmatprep.mubr.bf16.mxu0 %v692
        %1068 = vmatmul.mubr.bf16.gmra.mrb[0].mxu0 %v691
        %v1069 = vpop.f32.mrb[0].mxu0
        %v1070 = vadd.f32 0.0, %v1069
        %v1071 = vpop.f32.mrb[0].mxu0
        %v1072 = vadd.f32 0.0, %v1071
        %v1073 = vpop.f32.mrb[0].mxu0
        %v1074 = vadd.f32 0.0, %v1073
        %v1075 = vpop.f32.mrb[0].mxu0
        %v1076 = vadd.f32 0.0, %v1075
        %1077 = vdwg.mxu0
        %v1078 = vadd.f32 %v437, %v920
        %v1079 = vadd.f32 %v438, %v922
        %v1080 = vadd.f32 %v439, %v924
        %v1081 = vadd.f32 %v440, %v926
        %v1082 = vadd.f32 %v441, %v930
        %v1083 = vadd.f32 %v442, %v932
        %v1084 = vadd.f32 %v443, %v934
        %v1085 = vadd.f32 %v444, %v936
        %v1086 = vadd.f32 %v445, %v940
        %v1087 = vadd.f32 %v446, %v942
        %v1088 = vadd.f32 %v447, %v944
        %v1089 = vadd.f32 %v448, %v946
        %v1090 = vadd.f32 %v449, %v950
        %v1091 = vadd.f32 %v450, %v952
        %v1092 = vadd.f32 %v451, %v954
        %v1093 = vadd.f32 %v452, %v956
        %v1094 = vadd.f32 %v453, %v960
        %v1095 = vadd.f32 %v454, %v962
        %v1096 = vadd.f32 %v455, %v964
        %v1097 = vadd.f32 %v456, %v966
        %v1098 = vadd.f32 %v457, %v970
        %v1099 = vadd.f32 %v458, %v972
        %v1100 = vadd.f32 %v459, %v974
        %v1101 = vadd.f32 %v460, %v976
        %v1102 = vadd.f32 %v461, %v980
        %v1103 = vadd.f32 %v462, %v982
        %v1104 = vadd.f32 %v463, %v984
        %v1105 = vadd.f32 %v464, %v986
        %v1106 = vadd.f32 %v465, %v990
        %v1107 = vadd.f32 %v466, %v992
        %v1108 = vadd.f32 %v467, %v994
        %v1109 = vadd.f32 %v468, %v996
        %v1110 = vadd.f32 %v469, %v1000
        %v1111 = vadd.f32 %v470, %v1002
        %v1112 = vadd.f32 %v471, %v1004
        %v1113 = vadd.f32 %v472, %v1006
        %v1114 = vadd.f32 %v473, %v1010
        %v1115 = vadd.f32 %v474, %v1012
        %v1116 = vadd.f32 %v475, %v1014
        %v1117 = vadd.f32 %v476, %v1016
        %v1118 = vadd.f32 %v477, %v1020
        %v1119 = vadd.f32 %v478, %v1022
        %v1120 = vadd.f32 %v479, %v1024
        %v1121 = vadd.f32 %v480, %v1026
        %v1122 = vadd.f32 %v481, %v1030
        %v1123 = vadd.f32 %v482, %v1032
        %v1124 = vadd.f32 %v483, %v1034
        %v1125 = vadd.f32 %v484, %v1036
        %v1126 = vadd.f32 %v485, %v1040
        %v1127 = vadd.f32 %v486, %v1042
        %v1128 = vadd.f32 %v487, %v1044
        %v1129 = vadd.f32 %v488, %v1046
        %v1130 = vadd.f32 %v489, %v1050
        %v1131 = vadd.f32 %v490, %v1052
        %v1132 = vadd.f32 %v491, %v1054
        %v1133 = vadd.f32 %v492, %v1056
        %v1134 = vadd.f32 %v493, %v1060
        %v1135 = vadd.f32 %v494, %v1062
        %v1136 = vadd.f32 %v495, %v1064
        %v1137 = vadd.f32 %v496, %v1066
        %v1138 = vadd.f32 %v497, %v1070
        %v1139 = vadd.f32 %v498, %v1072
        %v1140 = vadd.f32 %v499, %v1074
        %v1141 = vadd.f32 %v500, %v1076
        %1142 = vst [vmem:[#allocation2] sm:$0xff] %v1078
        %1143 = vst [vmem:[#allocation2 + $0x8] sm:$0xff] %v1079
        %1144 = vst [vmem:[#allocation2 + $0x10] sm:$0xff] %v1080
        %1145 = vst [vmem:[#allocation2 + $0x18] sm:$0xff] %v1081
        %1146 = vst [vmem:[#allocation2 + $0x20] sm:$0xff] %v1082
        %1147 = vst [vmem:[#allocation2 + $0x28] sm:$0xff] %v1083
        %1148 = vst [vmem:[#allocation2 + $0x30] sm:$0xff] %v1084
        %1149 = vst [vmem:[#allocation2 + $0x38] sm:$0xff] %v1085
        %1150 = vst [vmem:[#allocation2 + $0x40] sm:$0xff] %v1086
        %1151 = vst [vmem:[#allocation2 + $0x48] sm:$0xff] %v1087
        %1152 = vst [vmem:[#allocation2 + $0x50] sm:$0xff] %v1088
        %1153 = vst [vmem:[#allocation2 + $0x58] sm:$0xff] %v1089
        %1154 = vst [vmem:[#allocation2 + $0x60] sm:$0xff] %v1090
        %1155 = vst [vmem:[#allocation2 + $0x68] sm:$0xff] %v1091
        %1156 = vst [vmem:[#allocation2 + $0x70] sm:$0xff] %v1092
        %1157 = vst [vmem:[#allocation2 + $0x78] sm:$0xff] %v1093
        %1158 = vst [vmem:[#allocation2 + $0x80] sm:$0xff] %v1094
        %1159 = vst [vmem:[#allocation2 + $0x88] sm:$0xff] %v1095
        %1160 = vst [vmem:[#allocation2 + $0x90] sm:$0xff] %v1096
        %1161 = vst [vmem:[#allocation2 + $0x98] sm:$0xff] %v1097
        %1162 = vst [vmem:[#allocation2 + $0xa0] sm:$0xff] %v1098
        %1163 = vst [vmem:[#allocation2 + $0xa8] sm:$0xff] %v1099
        %1164 = vst [vmem:[#allocation2 + $0xb0] sm:$0xff] %v1100
        %1165 = vst [vmem:[#allocation2 + $0xb8] sm:$0xff] %v1101
        %1166 = vst [vmem:[#allocation2 + $0xc0] sm:$0xff] %v1102
        %1167 = vst [vmem:[#allocation2 + $0xc8] sm:$0xff] %v1103
        %1168 = vst [vmem:[#allocation2 + $0xd0] sm:$0xff] %v1104
        %1169 = vst [vmem:[#allocation2 + $0xd8] sm:$0xff] %v1105
        %1170 = vst [vmem:[#allocation2 + $0xe0] sm:$0xff] %v1106
        %1171 = vst [vmem:[#allocation2 + $0xe8] sm:$0xff] %v1107
        %1172 = vst [vmem:[#allocation2 + $0xf0] sm:$0xff] %v1108
        %1173 = vst [vmem:[#allocation2 + $0xf8] sm:$0xff] %v1109
        %1174 = vst [vmem:[#allocation2 + $0x100] sm:$0xff] %v1110
        %1175 = vst [vmem:[#allocation2 + $0x108] sm:$0xff] %v1111
        %1176 = vst [vmem:[#allocation2 + $0x110] sm:$0xff] %v1112
        %1177 = vst [vmem:[#allocation2 + $0x118] sm:$0xff] %v1113
        %1178 = vst [vmem:[#allocation2 + $0x120] sm:$0xff] %v1114
        %1179 = vst [vmem:[#allocation2 + $0x128] sm:$0xff] %v1115
        %1180 = vst [vmem:[#allocation2 + $0x130] sm:$0xff] %v1116
        %1181 = vst [vmem:[#allocation2 + $0x138] sm:$0xff] %v1117
        %1182 = vst [vmem:[#allocation2 + $0x140] sm:$0xff] %v1118
        %1183 = vst [vmem:[#allocation2 + $0x148] sm:$0xff] %v1119
        %1184 = vst [vmem:[#allocation2 + $0x150] sm:$0xff] %v1120
        %1185 = vst [vmem:[#allocation2 + $0x158] sm:$0xff] %v1121
        %1186 = vst [vmem:[#allocation2 + $0x160] sm:$0xff] %v1122
        %1187 = vst [vmem:[#allocation2 + $0x168] sm:$0xff] %v1123
        %1188 = vst [vmem:[#allocation2 + $0x170] sm:$0xff] %v1124
        %1189 = vst [vmem:[#allocation2 + $0x178] sm:$0xff] %v1125
        %1190 = vst [vmem:[#allocation2 + $0x180] sm:$0xff] %v1126
        %1191 = vst [vmem:[#allocation2 + $0x188] sm:$0xff] %v1127
        %1192 = vst [vmem:[#allocation2 + $0x190] sm:$0xff] %v1128
        %1193 = vst [vmem:[#allocation2 + $0x198] sm:$0xff] %v1129
        %1194 = vst [vmem:[#allocation2 + $0x1a0] sm:$0xff] %v1130
        %1195 = vst [vmem:[#allocation2 + $0x1a8] sm:$0xff] %v1131
        %1196 = vst [vmem:[#allocation2 + $0x1b0] sm:$0xff] %v1132
        %1197 = vst [vmem:[#allocation2 + $0x1b8] sm:$0xff] %v1133
        %1198 = vst [vmem:[#allocation2 + $0x1c0] sm:$0xff] %v1134
        %1199 = vst [vmem:[#allocation2 + $0x1c8] sm:$0xff] %v1135
        %1200 = vst [vmem:[#allocation2 + $0x1d0] sm:$0xff] %v1136
        %1201 = vst [vmem:[#allocation2 + $0x1d8] sm:$0xff] %v1137
        %1202 = vst [vmem:[#allocation2 + $0x1e0] sm:$0xff] %v1138
        %1203 = vst [vmem:[#allocation2 + $0x1e8] sm:$0xff] %v1139
        %1204 = vst [vmem:[#allocation2 + $0x1f0] sm:$0xff] %v1140
        %1205 = vst [vmem:[#allocation2 + $0x1f8] sm:$0xff] %v1141
        // Predicated region
        $region61: #{tpu_custom_call.1} parent=39 // pred_check
          %p1206 = pneg %p369
        $region62: #{tpu_custom_call.1} parent=39 // pred_check_branch
          %1208 = sbr.rel (%p1206) target = $region64
        $region63: #{tpu_custom_call.1} parent=39 // pred_region
          %v1209 = vld [vmem:[#allocation2] sm:$0xff]
          %v1210 = vld [vmem:[#allocation2 + $0x8] sm:$0xff]
          %v1211 = vld [vmem:[#allocation2 + $0x10] sm:$0xff]
          %v1212 = vld [vmem:[#allocation2 + $0x18] sm:$0xff]
          %v1213 = vld [vmem:[#allocation2 + $0x20] sm:$0xff]
          %v1214 = vld [vmem:[#allocation2 + $0x28] sm:$0xff]
          %v1215 = vld [vmem:[#allocation2 + $0x30] sm:$0xff]
          %v1216 = vld [vmem:[#allocation2 + $0x38] sm:$0xff]
          %v1217 = vld [vmem:[#allocation2 + $0x40] sm:$0xff]
          %v1218 = vld [vmem:[#allocation2 + $0x48] sm:$0xff]
          %v1219 = vld [vmem:[#allocation2 + $0x50] sm:$0xff]
          %v1220 = vld [vmem:[#allocation2 + $0x58] sm:$0xff]
          %v1221 = vld [vmem:[#allocation2 + $0x60] sm:$0xff]
          %v1222 = vld [vmem:[#allocation2 + $0x68] sm:$0xff]
          %v1223 = vld [vmem:[#allocation2 + $0x70] sm:$0xff]
          %v1224 = vld [vmem:[#allocation2 + $0x78] sm:$0xff]
          %v1225 = vld [vmem:[#allocation2 + $0x80] sm:$0xff]
          %v1226 = vld [vmem:[#allocation2 + $0x88] sm:$0xff]
          %v1227 = vld [vmem:[#allocation2 + $0x90] sm:$0xff]
          %v1228 = vld [vmem:[#allocation2 + $0x98] sm:$0xff]
          %v1229 = vld [vmem:[#allocation2 + $0xa0] sm:$0xff]
          %v1230 = vld [vmem:[#allocation2 + $0xa8] sm:$0xff]
          %v1231 = vld [vmem:[#allocation2 + $0xb0] sm:$0xff]
          %v1232 = vld [vmem:[#allocation2 + $0xb8] sm:$0xff]
          %v1233 = vld [vmem:[#allocation2 + $0xc0] sm:$0xff]
          %v1234 = vld [vmem:[#allocation2 + $0xc8] sm:$0xff]
          %v1235 = vld [vmem:[#allocation2 + $0xd0] sm:$0xff]
          %v1236 = vld [vmem:[#allocation2 + $0xd8] sm:$0xff]
          %v1237 = vld [vmem:[#allocation2 + $0xe0] sm:$0xff]
          %v1238 = vld [vmem:[#allocation2 + $0xe8] sm:$0xff]
          %v1239 = vld [vmem:[#allocation2 + $0xf0] sm:$0xff]
          %v1240 = vld [vmem:[#allocation2 + $0xf8] sm:$0xff]
          %v1241 = vld [vmem:[#allocation2 + $0x100] sm:$0xff]
          %v1242 = vld [vmem:[#allocation2 + $0x108] sm:$0xff]
          %v1243 = vld [vmem:[#allocation2 + $0x110] sm:$0xff]
          %v1244 = vld [vmem:[#allocation2 + $0x118] sm:$0xff]
          %v1245 = vld [vmem:[#allocation2 + $0x120] sm:$0xff]
          %v1246 = vld [vmem:[#allocation2 + $0x128] sm:$0xff]
          %v1247 = vld [vmem:[#allocation2 + $0x130] sm:$0xff]
          %v1248 = vld [vmem:[#allocation2 + $0x138] sm:$0xff]
          %v1249 = vld [vmem:[#allocation2 + $0x140] sm:$0xff]
          %v1250 = vld [vmem:[#allocation2 + $0x148] sm:$0xff]
          %v1251 = vld [vmem:[#allocation2 + $0x150] sm:$0xff]
          %v1252 = vld [vmem:[#allocation2 + $0x158] sm:$0xff]
          %v1253 = vld [vmem:[#allocation2 + $0x160] sm:$0xff]
          %v1254 = vld [vmem:[#allocation2 + $0x168] sm:$0xff]
          %v1255 = vld [vmem:[#allocation2 + $0x170] sm:$0xff]
          %v1256 = vld [vmem:[#allocation2 + $0x178] sm:$0xff]
          %v1257 = vld [vmem:[#allocation2 + $0x180] sm:$0xff]
          %v1258 = vld [vmem:[#allocation2 + $0x188] sm:$0xff]
          %v1259 = vld [vmem:[#allocation2 + $0x190] sm:$0xff]
          %v1260 = vld [vmem:[#allocation2 + $0x198] sm:$0xff]
          %v1261 = vld [vmem:[#allocation2 + $0x1a0] sm:$0xff]
          %v1262 = vld [vmem:[#allocation2 + $0x1a8] sm:$0xff]
          %v1263 = vld [vmem:[#allocation2 + $0x1b0] sm:$0xff]
          %v1264 = vld [vmem:[#allocation2 + $0x1b8] sm:$0xff]
          %v1265 = vld [vmem:[#allocation2 + $0x1c0] sm:$0xff]
          %v1266 = vld [vmem:[#allocation2 + $0x1c8] sm:$0xff]
          %v1267 = vld [vmem:[#allocation2 + $0x1d0] sm:$0xff]
          %v1268 = vld [vmem:[#allocation2 + $0x1d8] sm:$0xff]
          %v1269 = vld [vmem:[#allocation2 + $0x1e0] sm:$0xff]
          %v1270 = vld [vmem:[#allocation2 + $0x1e8] sm:$0xff]
          %v1271 = vld [vmem:[#allocation2 + $0x1f0] sm:$0xff]
          %v1272 = vld [vmem:[#allocation2 + $0x1f8] sm:$0xff]
          %v1273 = vld [vmem:[%s363] sm:$0x3]
          %v1275 = vlaneseq
          %v1276 = vshrl.u32 %v1275, 7
          %v1277 = vsub.s32 0, %v1276
          %v1278 = vrot.slane %v1273, %v1277
          %v1279 = vlaneseq
          %v1280 = vshrl.u32 %v1279, 7
          %v1281 = vsub.s32 1, %v1280
          %v1282 = vrot.slane %v1273, %v1281
          %v1285 = vadd.f32 %v1209, %v1278
          %v1286 = vadd.f32 %v1210, %v1282
          %v1287 = vadd.f32 %v1211, %v1278
          %v1288 = vadd.f32 %v1212, %v1282
          %v1289 = vadd.f32 %v1213, %v1278
          %v1290 = vadd.f32 %v1214, %v1282
          %v1291 = vadd.f32 %v1215, %v1278
          %v1292 = vadd.f32 %v1216, %v1282
          %v1293 = vadd.f32 %v1217, %v1278
          %v1294 = vadd.f32 %v1218, %v1282
          %v1295 = vadd.f32 %v1219, %v1278
          %v1296 = vadd.f32 %v1220, %v1282
          %v1297 = vadd.f32 %v1221, %v1278
          %v1298 = vadd.f32 %v1222, %v1282
          %v1299 = vadd.f32 %v1223, %v1278
          %v1300 = vadd.f32 %v1224, %v1282
          %v1301 = vadd.f32 %v1225, %v1278
          %v1302 = vadd.f32 %v1226, %v1282
          %v1303 = vadd.f32 %v1227, %v1278
          %v1304 = vadd.f32 %v1228, %v1282
          %v1305 = vadd.f32 %v1229, %v1278
          %v1306 = vadd.f32 %v1230, %v1282
          %v1307 = vadd.f32 %v1231, %v1278
          %v1308 = vadd.f32 %v1232, %v1282
          %v1309 = vadd.f32 %v1233, %v1278
          %v1310 = vadd.f32 %v1234, %v1282
          %v1311 = vadd.f32 %v1235, %v1278
          %v1312 = vadd.f32 %v1236, %v1282
          %v1313 = vadd.f32 %v1237, %v1278
          %v1314 = vadd.f32 %v1238, %v1282
          %v1315 = vadd.f32 %v1239, %v1278
          %v1316 = vadd.f32 %v1240, %v1282
          %v1317 = vadd.f32 %v1241, %v1278
          %v1318 = vadd.f32 %v1242, %v1282
          %v1319 = vadd.f32 %v1243, %v1278
          %v1320 = vadd.f32 %v1244, %v1282
          %v1321 = vadd.f32 %v1245, %v1278
          %v1322 = vadd.f32 %v1246, %v1282
          %v1323 = vadd.f32 %v1247, %v1278
          %v1324 = vadd.f32 %v1248, %v1282
          %v1325 = vadd.f32 %v1249, %v1278
          %v1326 = vadd.f32 %v1250, %v1282
          %v1327 = vadd.f32 %v1251, %v1278
          %v1328 = vadd.f32 %v1252, %v1282
          %v1329 = vadd.f32 %v1253, %v1278
          %v1330 = vadd.f32 %v1254, %v1282
          %v1331 = vadd.f32 %v1255, %v1278
          %v1332 = vadd.f32 %v1256, %v1282
          %v1333 = vadd.f32 %v1257, %v1278
          %v1334 = vadd.f32 %v1258, %v1282
          %v1335 = vadd.f32 %v1259, %v1278
          %v1336 = vadd.f32 %v1260, %v1282
          %v1337 = vadd.f32 %v1261, %v1278
          %v1338 = vadd.f32 %v1262, %v1282
          %v1339 = vadd.f32 %v1263, %v1278
          %v1340 = vadd.f32 %v1264, %v1282
          %v1341 = vadd.f32 %v1265, %v1278
          %v1342 = vadd.f32 %v1266, %v1282
          %v1343 = vadd.f32 %v1267, %v1278
          %v1344 = vadd.f32 %v1268, %v1282
          %v1345 = vadd.f32 %v1269, %v1278
          %v1346 = vadd.f32 %v1270, %v1282
          %v1347 = vadd.f32 %v1271, %v1278
          %v1348 = vadd.f32 %v1272, %v1282
          %v1349 = vld [vmem:[#allocation8] sm:$0xff]
          %v1350 = vld [vmem:[#allocation8 + $0x8] sm:$0xff]
          %v1351 = vld [vmem:[#allocation8 + $0x10] sm:$0xff]
          %v1352 = vld [vmem:[#allocation8 + $0x18] sm:$0xff]
          %v1353 = vld [vmem:[#allocation8 + $0x20] sm:$0xff]
          %v1354 = vld [vmem:[#allocation8 + $0x28] sm:$0xff]
          %v1355 = vld [vmem:[#allocation8 + $0x30] sm:$0xff]
          %v1356 = vld [vmem:[#allocation8 + $0x38] sm:$0xff]
          %v1357 = vld [vmem:[#allocation8 + $0x40] sm:$0xff]
          %v1358 = vld [vmem:[#allocation8 + $0x48] sm:$0xff]
          %v1359 = vld [vmem:[#allocation8 + $0x50] sm:$0xff]
          %v1360 = vld [vmem:[#allocation8 + $0x58] sm:$0xff]
          %v1361 = vld [vmem:[#allocation8 + $0x60] sm:$0xff]
          %v1362 = vld [vmem:[#allocation8 + $0x68] sm:$0xff]
          %v1363 = vld [vmem:[#allocation8 + $0x70] sm:$0xff]
          %v1364 = vld [vmem:[#allocation8 + $0x78] sm:$0xff]
          %v1365 = vld [vmem:[#allocation8 + $0x80] sm:$0xff]
          %v1366 = vld [vmem:[#allocation8 + $0x88] sm:$0xff]
          %v1367 = vld [vmem:[#allocation8 + $0x90] sm:$0xff]
          %v1368 = vld [vmem:[#allocation8 + $0x98] sm:$0xff]
          %v1369 = vld [vmem:[#allocation8 + $0xa0] sm:$0xff]
          %v1370 = vld [vmem:[#allocation8 + $0xa8] sm:$0xff]
          %v1371 = vld [vmem:[#allocation8 + $0xb0] sm:$0xff]
          %v1372 = vld [vmem:[#allocation8 + $0xb8] sm:$0xff]
          %v1373 = vld [vmem:[#allocation8 + $0xc0] sm:$0xff]
          %v1374 = vld [vmem:[#allocation8 + $0xc8] sm:$0xff]
          %v1375 = vld [vmem:[#allocation8 + $0xd0] sm:$0xff]
          %v1376 = vld [vmem:[#allocation8 + $0xd8] sm:$0xff]
          %v1377 = vld [vmem:[#allocation8 + $0xe0] sm:$0xff]
          %v1378 = vld [vmem:[#allocation8 + $0xe8] sm:$0xff]
          %v1379 = vld [vmem:[#allocation8 + $0xf0] sm:$0xff]
          %v1380 = vld [vmem:[#allocation8 + $0xf8] sm:$0xff]
          %v1381 = vld [vmem:[#allocation9] sm:$0xff]
          %v1382 = vld [vmem:[#allocation9 + $0x8] sm:$0xff]
          %v1383 = vld [vmem:[#allocation9 + $0x10] sm:$0xff]
          %v1384 = vld [vmem:[#allocation9 + $0x18] sm:$0xff]
          %v1385 = vld [vmem:[#allocation9 + $0x20] sm:$0xff]
          %v1386 = vld [vmem:[#allocation9 + $0x28] sm:$0xff]
          %v1387 = vld [vmem:[#allocation9 + $0x30] sm:$0xff]
          %v1388 = vld [vmem:[#allocation9 + $0x38] sm:$0xff]
          %v1389 = vld [vmem:[#allocation9 + $0x40] sm:$0xff]
          %v1390 = vld [vmem:[#allocation9 + $0x48] sm:$0xff]
          %v1391 = vld [vmem:[#allocation9 + $0x50] sm:$0xff]
          %v1392 = vld [vmem:[#allocation9 + $0x58] sm:$0xff]
          %v1393 = vld [vmem:[#allocation9 + $0x60] sm:$0xff]
          %v1394 = vld [vmem:[#allocation9 + $0x68] sm:$0xff]
          %v1395 = vld [vmem:[#allocation9 + $0x70] sm:$0xff]
          %v1396 = vld [vmem:[#allocation9 + $0x78] sm:$0xff]
          %v1397 = vld [vmem:[#allocation9 + $0x80] sm:$0xff]
          %v1398 = vld [vmem:[#allocation9 + $0x88] sm:$0xff]
          %v1399 = vld [vmem:[#allocation9 + $0x90] sm:$0xff]
          %v1400 = vld [vmem:[#allocation9 + $0x98] sm:$0xff]
          %v1401 = vld [vmem:[#allocation9 + $0xa0] sm:$0xff]
          %v1402 = vld [vmem:[#allocation9 + $0xa8] sm:$0xff]
          %v1403 = vld [vmem:[#allocation9 + $0xb0] sm:$0xff]
          %v1404 = vld [vmem:[#allocation9 + $0xb8] sm:$0xff]
          %v1405 = vld [vmem:[#allocation9 + $0xc0] sm:$0xff]
          %v1406 = vld [vmem:[#allocation9 + $0xc8] sm:$0xff]
          %v1407 = vld [vmem:[#allocation9 + $0xd0] sm:$0xff]
          %v1408 = vld [vmem:[#allocation9 + $0xd8] sm:$0xff]
          %v1409 = vld [vmem:[#allocation9 + $0xe0] sm:$0xff]
          %v1410 = vld [vmem:[#allocation9 + $0xe8] sm:$0xff]
          %v1411 = vld [vmem:[#allocation9 + $0xf0] sm:$0xff]
          %v1412 = vld [vmem:[#allocation9 + $0xf8] sm:$0xff]
          %v1413 = vmul.f32 %v1285, %v1349
          %v1414 = vmul.f32 %v1287, %v1350
          %v1415 = vmul.f32 %v1289, %v1351
          %v1416 = vmul.f32 %v1291, %v1352
          %v1417 = vmul.f32 %v1293, %v1353
          %v1418 = vmul.f32 %v1295, %v1354
          %v1419 = vmul.f32 %v1297, %v1355
          %v1420 = vmul.f32 %v1299, %v1356
          %v1421 = vmul.f32 %v1301, %v1357
          %v1422 = vmul.f32 %v1303, %v1358
          %v1423 = vmul.f32 %v1305, %v1359
          %v1424 = vmul.f32 %v1307, %v1360
          %v1425 = vmul.f32 %v1309, %v1361
          %v1426 = vmul.f32 %v1311, %v1362
          %v1427 = vmul.f32 %v1313, %v1363
          %v1428 = vmul.f32 %v1315, %v1364
          %v1429 = vmul.f32 %v1317, %v1365
          %v1430 = vmul.f32 %v1319, %v1366
          %v1431 = vmul.f32 %v1321, %v1367
          %v1432 = vmul.f32 %v1323, %v1368
          %v1433 = vmul.f32 %v1325, %v1369
          %v1434 = vmul.f32 %v1327, %v1370
          %v1435 = vmul.f32 %v1329, %v1371
          %v1436 = vmul.f32 %v1331, %v1372
          %v1437 = vmul.f32 %v1333, %v1373
          %v1438 = vmul.f32 %v1335, %v1374
          %v1439 = vmul.f32 %v1337, %v1375
          %v1440 = vmul.f32 %v1339, %v1376
          %v1441 = vmul.f32 %v1341, %v1377
          %v1442 = vmul.f32 %v1343, %v1378
          %v1443 = vmul.f32 %v1345, %v1379
          %v1444 = vmul.f32 %v1347, %v1380
          %1445 = vrot.lane.b32.xlu0 %v1285, 64
          %v1446 = vpop.permute.xlu0 %1445
          %1447 = vrot.lane.b32.xlu0 %v1287, 64
          %v1448 = vpop.permute.xlu0 %1447
          %1449 = vrot.lane.b32.xlu0 %v1289, 64
          %v1450 = vpop.permute.xlu0 %1449
          %1451 = vrot.lane.b32.xlu0 %v1291, 64
          %v1452 = vpop.permute.xlu0 %1451
          %1453 = vrot.lane.b32.xlu0 %v1293, 64
          %v1454 = vpop.permute.xlu0 %1453
          %1455 = vrot.lane.b32.xlu0 %v1295, 64
          %v1456 = vpop.permute.xlu0 %1455
          %1457 = vrot.lane.b32.xlu0 %v1297, 64
          %v1458 = vpop.permute.xlu0 %1457
          %1459 = vrot.lane.b32.xlu0 %v1299, 64
          %v1460 = vpop.permute.xlu0 %1459
          %1461 = vrot.lane.b32.xlu0 %v1301, 64
          %v1462 = vpop.permute.xlu0 %1461
          %1463 = vrot.lane.b32.xlu0 %v1303, 64
          %v1464 = vpop.permute.xlu0 %1463
          %1465 = vrot.lane.b32.xlu0 %v1305, 64
          %v1466 = vpop.permute.xlu0 %1465
          %1467 = vrot.lane.b32.xlu0 %v1307, 64
          %v1468 = vpop.permute.xlu0 %1467
          %1469 = vrot.lane.b32.xlu0 %v1309, 64
          %v1470 = vpop.permute.xlu0 %1469
          %1471 = vrot.lane.b32.xlu0 %v1311, 64
          %v1472 = vpop.permute.xlu0 %1471
          %1473 = vrot.lane.b32.xlu0 %v1313, 64
          %v1474 = vpop.permute.xlu0 %1473
          %1475 = vrot.lane.b32.xlu0 %v1315, 64
          %v1476 = vpop.permute.xlu0 %1475
          %1477 = vrot.lane.b32.xlu0 %v1317, 64
          %v1478 = vpop.permute.xlu0 %1477
          %1479 = vrot.lane.b32.xlu0 %v1319, 64
          %v1480 = vpop.permute.xlu0 %1479
          %1481 = vrot.lane.b32.xlu0 %v1321, 64
          %v1482 = vpop.permute.xlu0 %1481
          %1483 = vrot.lane.b32.xlu0 %v1323, 64
          %v1484 = vpop.permute.xlu0 %1483
          %1485 = vrot.lane.b32.xlu0 %v1325, 64
          %v1486 = vpop.permute.xlu0 %1485
          %1487 = vrot.lane.b32.xlu0 %v1327, 64
          %v1488 = vpop.permute.xlu0 %1487
          %1489 = vrot.lane.b32.xlu0 %v1329, 64
          %v1490 = vpop.permute.xlu0 %1489
          %1491 = vrot.lane.b32.xlu0 %v1331, 64
          %v1492 = vpop.permute.xlu0 %1491
          %1493 = vrot.lane.b32.xlu0 %v1333, 64
          %v1494 = vpop.permute.xlu0 %1493
          %1495 = vrot.lane.b32.xlu0 %v1335, 64
          %v1496 = vpop.permute.xlu0 %1495
          %1497 = vrot.lane.b32.xlu0 %v1337, 64
          %v1498 = vpop.permute.xlu0 %1497
          %1499 = vrot.lane.b32.xlu0 %v1339, 64
          %v1500 = vpop.permute.xlu0 %1499
          %1501 = vrot.lane.b32.xlu0 %v1341, 64
          %v1502 = vpop.permute.xlu0 %1501
          %1503 = vrot.lane.b32.xlu0 %v1343, 64
          %v1504 = vpop.permute.xlu0 %1503
          %1505 = vrot.lane.b32.xlu0 %v1345, 64
          %v1506 = vpop.permute.xlu0 %1505
          %1507 = vrot.lane.b32.xlu0 %v1347, 64
          %v1508 = vpop.permute.xlu0 %1507
          %v1509 = vmul.f32 %v1446, %v1381
          %v1510 = vmul.f32 %v1448, %v1382
          %v1511 = vmul.f32 %v1450, %v1383
          %v1512 = vmul.f32 %v1452, %v1384
          %v1513 = vmul.f32 %v1454, %v1385
          %v1514 = vmul.f32 %v1456, %v1386
          %v1515 = vmul.f32 %v1458, %v1387
          %v1516 = vmul.f32 %v1460, %v1388
          %v1517 = vmul.f32 %v1462, %v1389
          %v1518 = vmul.f32 %v1464, %v1390
          %v1519 = vmul.f32 %v1466, %v1391
          %v1520 = vmul.f32 %v1468, %v1392
          %v1521 = vmul.f32 %v1470, %v1393
          %v1522 = vmul.f32 %v1472, %v1394
          %v1523 = vmul.f32 %v1474, %v1395
          %v1524 = vmul.f32 %v1476, %v1396
          %v1525 = vmul.f32 %v1478, %v1397
          %v1526 = vmul.f32 %v1480, %v1398
          %v1527 = vmul.f32 %v1482, %v1399
          %v1528 = vmul.f32 %v1484, %v1400
          %v1529 = vmul.f32 %v1486, %v1401
          %v1530 = vmul.f32 %v1488, %v1402
          %v1531 = vmul.f32 %v1490, %v1403
          %v1532 = vmul.f32 %v1492, %v1404
          %v1533 = vmul.f32 %v1494, %v1405
          %v1534 = vmul.f32 %v1496, %v1406
          %v1535 = vmul.f32 %v1498, %v1407
          %v1536 = vmul.f32 %v1500, %v1408
          %v1537 = vmul.f32 %v1502, %v1409
          %v1538 = vmul.f32 %v1504, %v1410
          %v1539 = vmul.f32 %v1506, %v1411
          %v1540 = vmul.f32 %v1508, %v1412
          %v1541 = vadd.f32 %v1413, %v1509
          %v1542 = vadd.f32 %v1414, %v1510
          %v1543 = vadd.f32 %v1415, %v1511
          %v1544 = vadd.f32 %v1416, %v1512
          %v1545 = vadd.f32 %v1417, %v1513
          %v1546 = vadd.f32 %v1418, %v1514
          %v1547 = vadd.f32 %v1419, %v1515
          %v1548 = vadd.f32 %v1420, %v1516
          %v1549 = vadd.f32 %v1421, %v1517
          %v1550 = vadd.f32 %v1422, %v1518
          %v1551 = vadd.f32 %v1423, %v1519
          %v1552 = vadd.f32 %v1424, %v1520
          %v1553 = vadd.f32 %v1425, %v1521
          %v1554 = vadd.f32 %v1426, %v1522
          %v1555 = vadd.f32 %v1427, %v1523
          %v1556 = vadd.f32 %v1428, %v1524
          %v1557 = vadd.f32 %v1429, %v1525
          %v1558 = vadd.f32 %v1430, %v1526
          %v1559 = vadd.f32 %v1431, %v1527
          %v1560 = vadd.f32 %v1432, %v1528
          %v1561 = vadd.f32 %v1433, %v1529
          %v1562 = vadd.f32 %v1434, %v1530
          %v1563 = vadd.f32 %v1435, %v1531
          %v1564 = vadd.f32 %v1436, %v1532
          %v1565 = vadd.f32 %v1437, %v1533
          %v1566 = vadd.f32 %v1438, %v1534
          %v1567 = vadd.f32 %v1439, %v1535
          %v1568 = vadd.f32 %v1440, %v1536
          %v1569 = vadd.f32 %v1441, %v1537
          %v1570 = vadd.f32 %v1442, %v1538
          %v1571 = vadd.f32 %v1443, %v1539
          %v1572 = vadd.f32 %v1444, %v1540
          %s1573 = smul.u32 %s30, 2
          %p1574 = scmp.lt.s32.totalorder %s1573, 3
          %s1575 = scalar_select %p1574, 1, 0
          %v1576 = vstv %s1575
          %vm1577 = vcmp.eq.s32.totalorder %v1576, 1
          %v1578 = vsel %vm1577, %v1541, %v1285
          %v1579 = vsel %vm1577, %v1542, %v1287
          %v1580 = vsel %vm1577, %v1543, %v1289
          %v1581 = vsel %vm1577, %v1544, %v1291
          %v1582 = vsel %vm1577, %v1545, %v1293
          %v1583 = vsel %vm1577, %v1546, %v1295
          %v1584 = vsel %vm1577, %v1547, %v1297
          %v1585 = vsel %vm1577, %v1548, %v1299
          %v1586 = vsel %vm1577, %v1549, %v1301
          %v1587 = vsel %vm1577, %v1550, %v1303
          %v1588 = vsel %vm1577, %v1551, %v1305
          %v1589 = vsel %vm1577, %v1552, %v1307
          %v1590 = vsel %vm1577, %v1553, %v1309
          %v1591 = vsel %vm1577, %v1554, %v1311
          %v1592 = vsel %vm1577, %v1555, %v1313
          %v1593 = vsel %vm1577, %v1556, %v1315
          %v1594 = vsel %vm1577, %v1557, %v1317
          %v1595 = vsel %vm1577, %v1558, %v1319
          %v1596 = vsel %vm1577, %v1559, %v1321
          %v1597 = vsel %vm1577, %v1560, %v1323
          %v1598 = vsel %vm1577, %v1561, %v1325
          %v1599 = vsel %vm1577, %v1562, %v1327
          %v1600 = vsel %vm1577, %v1563, %v1329
          %v1601 = vsel %vm1577, %v1564, %v1331
          %v1602 = vsel %vm1577, %v1565, %v1333
          %v1603 = vsel %vm1577, %v1566, %v1335
          %v1604 = vsel %vm1577, %v1567, %v1337
          %v1605 = vsel %vm1577, %v1568, %v1339
          %v1606 = vsel %vm1577, %v1569, %v1341
          %v1607 = vsel %vm1577, %v1570, %v1343
          %v1608 = vsel %vm1577, %v1571, %v1345
          %v1609 = vsel %vm1577, %v1572, %v1347
          %v1610 = vpack.c.bf16 %v1579, %v1578
          %v1611 = vpack.c.bf16 %v1581, %v1580
          %v1612 = vpack.c.bf16 %v1583, %v1582
          %v1613 = vpack.c.bf16 %v1585, %v1584
          %v1614 = vpack.c.bf16 %v1587, %v1586
          %v1615 = vpack.c.bf16 %v1589, %v1588
          %v1616 = vpack.c.bf16 %v1591, %v1590
          %v1617 = vpack.c.bf16 %v1593, %v1592
          %v1618 = vpack.c.bf16 %v1595, %v1594
          %v1619 = vpack.c.bf16 %v1597, %v1596
          %v1620 = vpack.c.bf16 %v1599, %v1598
          %v1621 = vpack.c.bf16 %v1601, %v1600
          %v1622 = vpack.c.bf16 %v1603, %v1602
          %v1623 = vpack.c.bf16 %v1605, %v1604
          %v1624 = vpack.c.bf16 %v1607, %v1606
          %v1625 = vpack.c.bf16 %v1609, %v1608
          %v1642 = vunpack.c.l.b16 %v1610
          %v1643 = vunpack.c.h.b16 %v1610
          %v1644 = vunpack.c.l.b16 %v1611
          %v1645 = vunpack.c.h.b16 %v1611
          %v1646 = vunpack.c.l.b16 %v1612
          %v1647 = vunpack.c.h.b16 %v1612
          %v1648 = vunpack.c.l.b16 %v1613
          %v1649 = vunpack.c.h.b16 %v1613
          %v1650 = vunpack.c.l.b16 %v1614
          %v1651 = vunpack.c.h.b16 %v1614
          %v1652 = vunpack.c.l.b16 %v1615
          %v1653 = vunpack.c.h.b16 %v1615
          %v1654 = vunpack.c.l.b16 %v1616
          %v1655 = vunpack.c.h.b16 %v1616
          %v1656 = vunpack.c.l.b16 %v1617
          %v1657 = vunpack.c.h.b16 %v1617
          %v1658 = vunpack.c.l.b16 %v1618
          %v1659 = vunpack.c.h.b16 %v1618
          %v1660 = vunpack.c.l.b16 %v1619
          %v1661 = vunpack.c.h.b16 %v1619
          %v1662 = vunpack.c.l.b16 %v1620
          %v1663 = vunpack.c.h.b16 %v1620
          %v1664 = vunpack.c.l.b16 %v1621
          %v1665 = vunpack.c.h.b16 %v1621
          %v1666 = vunpack.c.l.b16 %v1622
          %v1667 = vunpack.c.h.b16 %v1622
          %v1668 = vunpack.c.l.b16 %v1623
          %v1669 = vunpack.c.h.b16 %v1623
          %v1670 = vunpack.c.l.b16 %v1624
          %v1671 = vunpack.c.h.b16 %v1624
          %v1672 = vunpack.c.l.b16 %v1625
          %v1673 = vunpack.c.h.b16 %v1625
          %v1674 = vpack.c.b16 %v1642, %v1642
          %v1675 = vpack.c.b16 %v1643, %v1643
          %v1676 = vpack.c.b16 %v1644, %v1644
          %v1677 = vpack.c.b16 %v1645, %v1645
          %v1678 = vpack.c.b16 %v1646, %v1646
          %v1679 = vpack.c.b16 %v1647, %v1647
          %v1680 = vpack.c.b16 %v1648, %v1648
          %v1681 = vpack.c.b16 %v1649, %v1649
          %v1682 = vpack.c.b16 %v1650, %v1650
          %v1683 = vpack.c.b16 %v1651, %v1651
          %v1684 = vpack.c.b16 %v1652, %v1652
          %v1685 = vpack.c.b16 %v1653, %v1653
          %v1686 = vpack.c.b16 %v1654, %v1654
          %v1687 = vpack.c.b16 %v1655, %v1655
          %v1688 = vpack.c.b16 %v1656, %v1656
          %v1689 = vpack.c.b16 %v1657, %v1657
          %v1690 = vpack.c.b16 %v1658, %v1658
          %v1691 = vpack.c.b16 %v1659, %v1659
          %v1692 = vpack.c.b16 %v1660, %v1660
          %v1693 = vpack.c.b16 %v1661, %v1661
          %v1694 = vpack.c.b16 %v1662, %v1662
          %v1695 = vpack.c.b16 %v1663, %v1663
          %v1696 = vpack.c.b16 %v1664, %v1664
          %v1697 = vpack.c.b16 %v1665, %v1665
          %v1698 = vpack.c.b16 %v1666, %v1666
          %v1699 = vpack.c.b16 %v1667, %v1667
          %v1700 = vpack.c.b16 %v1668, %v1668
          %v1701 = vpack.c.b16 %v1669, %v1669
          %v1702 = vpack.c.b16 %v1670, %v1670
          %v1703 = vpack.c.b16 %v1671, %v1671
          %v1704 = vpack.c.b16 %v1672, %v1672
          %v1705 = vpack.c.b16 %v1673, %v1673
          %1738 = vst [vmem:[%s355] sm:$0xf] %v1674
          %1739 = vst [vmem:[%s355 + $0x8] sm:$0xf] %v1675
          %1740 = vst [vmem:[%s355 + $0x10] sm:$0xf] %v1676
          %1741 = vst [vmem:[%s355 + $0x18] sm:$0xf] %v1677
          %1742 = vst [vmem:[%s355 + $0x20] sm:$0xf] %v1678
          %1743 = vst [vmem:[%s355 + $0x28] sm:$0xf] %v1679
          %1744 = vst [vmem:[%s355 + $0x30] sm:$0xf] %v1680
          %1745 = vst [vmem:[%s355 + $0x38] sm:$0xf] %v1681
          %1746 = vst [vmem:[%s355 + $0x40] sm:$0xf] %v1682
          %1747 = vst [vmem:[%s355 + $0x48] sm:$0xf] %v1683
          %1748 = vst [vmem:[%s355 + $0x50] sm:$0xf] %v1684
          %1749 = vst [vmem:[%s355 + $0x58] sm:$0xf] %v1685
          %1750 = vst [vmem:[%s355 + $0x60] sm:$0xf] %v1686
          %1751 = vst [vmem:[%s355 + $0x68] sm:$0xf] %v1687
          %1752 = vst [vmem:[%s355 + $0x70] sm:$0xf] %v1688
          %1753 = vst [vmem:[%s355 + $0x78] sm:$0xf] %v1689
          %1754 = vst [vmem:[%s355 + $0x80] sm:$0xf] %v1690
          %1755 = vst [vmem:[%s355 + $0x88] sm:$0xf] %v1691
          %1756 = vst [vmem:[%s355 + $0x90] sm:$0xf] %v1692
          %1757 = vst [vmem:[%s355 + $0x98] sm:$0xf] %v1693
          %1758 = vst [vmem:[%s355 + $0xa0] sm:$0xf] %v1694
          %1759 = vst [vmem:[%s355 + $0xa8] sm:$0xf] %v1695
          %1760 = vst [vmem:[%s355 + $0xb0] sm:$0xf] %v1696
          %1761 = vst [vmem:[%s355 + $0xb8] sm:$0xf] %v1697
          %1762 = vst [vmem:[%s355 + $0xc0] sm:$0xf] %v1698
          %1763 = vst [vmem:[%s355 + $0xc8] sm:$0xf] %v1699
          %1764 = vst [vmem:[%s355 + $0xd0] sm:$0xf] %v1700
          %1765 = vst [vmem:[%s355 + $0xd8] sm:$0xf] %v1701
          %1766 = vst [vmem:[%s355 + $0xe0] sm:$0xf] %v1702
          %1767 = vst [vmem:[%s355 + $0xe8] sm:$0xf] %v1703
          %1768 = vst [vmem:[%s355 + $0xf0] sm:$0xf] %v1704
          %1769 = vst [vmem:[%s355 + $0xf8] sm:$0xf] %v1705
          %v1770 = vmul.f32 %v1286, %v1349
          %v1771 = vmul.f32 %v1288, %v1350
          %v1772 = vmul.f32 %v1290, %v1351
          %v1773 = vmul.f32 %v1292, %v1352
          %v1774 = vmul.f32 %v1294, %v1353
          %v1775 = vmul.f32 %v1296, %v1354
          %v1776 = vmul.f32 %v1298, %v1355
          %v1777 = vmul.f32 %v1300, %v1356
          %v1778 = vmul.f32 %v1302, %v1357
          %v1779 = vmul.f32 %v1304, %v1358
          %v1780 = vmul.f32 %v1306, %v1359
          %v1781 = vmul.f32 %v1308, %v1360
          %v1782 = vmul.f32 %v1310, %v1361
          %v1783 = vmul.f32 %v1312, %v1362
          %v1784 = vmul.f32 %v1314, %v1363
          %v1785 = vmul.f32 %v1316, %v1364
          %v1786 = vmul.f32 %v1318, %v1365
          %v1787 = vmul.f32 %v1320, %v1366
          %v1788 = vmul.f32 %v1322, %v1367
          %v1789 = vmul.f32 %v1324, %v1368
          %v1790 = vmul.f32 %v1326, %v1369
          %v1791 = vmul.f32 %v1328, %v1370
          %v1792 = vmul.f32 %v1330, %v1371
          %v1793 = vmul.f32 %v1332, %v1372
          %v1794 = vmul.f32 %v1334, %v1373
          %v1795 = vmul.f32 %v1336, %v1374
          %v1796 = vmul.f32 %v1338, %v1375
          %v1797 = vmul.f32 %v1340, %v1376
          %v1798 = vmul.f32 %v1342, %v1377
          %v1799 = vmul.f32 %v1344, %v1378
          %v1800 = vmul.f32 %v1346, %v1379
          %v1801 = vmul.f32 %v1348, %v1380
          %1802 = vrot.lane.b32.xlu0 %v1286, 64
          %v1803 = vpop.permute.xlu0 %1802
          %1804 = vrot.lane.b32.xlu0 %v1288, 64
          %v1805 = vpop.permute.xlu0 %1804
          %1806 = vrot.lane.b32.xlu0 %v1290, 64
          %v1807 = vpop.permute.xlu0 %1806
          %1808 = vrot.lane.b32.xlu0 %v1292, 64
          %v1809 = vpop.permute.xlu0 %1808
          %1810 = vrot.lane.b32.xlu0 %v1294, 64
          %v1811 = vpop.permute.xlu0 %1810
          %1812 = vrot.lane.b32.xlu0 %v1296, 64
          %v1813 = vpop.permute.xlu0 %1812
          %1814 = vrot.lane.b32.xlu0 %v1298, 64
          %v1815 = vpop.permute.xlu0 %1814
          %1816 = vrot.lane.b32.xlu0 %v1300, 64
          %v1817 = vpop.permute.xlu0 %1816
          %1818 = vrot.lane.b32.xlu0 %v1302, 64
          %v1819 = vpop.permute.xlu0 %1818
          %1820 = vrot.lane.b32.xlu0 %v1304, 64
          %v1821 = vpop.permute.xlu0 %1820
          %1822 = vrot.lane.b32.xlu0 %v1306, 64
          %v1823 = vpop.permute.xlu0 %1822
          %1824 = vrot.lane.b32.xlu0 %v1308, 64
          %v1825 = vpop.permute.xlu0 %1824
          %1826 = vrot.lane.b32.xlu0 %v1310, 64
          %v1827 = vpop.permute.xlu0 %1826
          %1828 = vrot.lane.b32.xlu0 %v1312, 64
          %v1829 = vpop.permute.xlu0 %1828
          %1830 = vrot.lane.b32.xlu0 %v1314, 64
          %v1831 = vpop.permute.xlu0 %1830
          %1832 = vrot.lane.b32.xlu0 %v1316, 64
          %v1833 = vpop.permute.xlu0 %1832
          %1834 = vrot.lane.b32.xlu0 %v1318, 64
          %v1835 = vpop.permute.xlu0 %1834
          %1836 = vrot.lane.b32.xlu0 %v1320, 64
          %v1837 = vpop.permute.xlu0 %1836
          %1838 = vrot.lane.b32.xlu0 %v1322, 64
          %v1839 = vpop.permute.xlu0 %1838
          %1840 = vrot.lane.b32.xlu0 %v1324, 64
          %v1841 = vpop.permute.xlu0 %1840
          %1842 = vrot.lane.b32.xlu0 %v1326, 64
          %v1843 = vpop.permute.xlu0 %1842
          %1844 = vrot.lane.b32.xlu0 %v1328, 64
          %v1845 = vpop.permute.xlu0 %1844
          %1846 = vrot.lane.b32.xlu0 %v1330, 64
          %v1847 = vpop.permute.xlu0 %1846
          %1848 = vrot.lane.b32.xlu0 %v1332, 64
          %v1849 = vpop.permute.xlu0 %1848
          %1850 = vrot.lane.b32.xlu0 %v1334, 64
          %v1851 = vpop.permute.xlu0 %1850
          %1852 = vrot.lane.b32.xlu0 %v1336, 64
          %v1853 = vpop.permute.xlu0 %1852
          %1854 = vrot.lane.b32.xlu0 %v1338, 64
          %v1855 = vpop.permute.xlu0 %1854
          %1856 = vrot.lane.b32.xlu0 %v1340, 64
          %v1857 = vpop.permute.xlu0 %1856
          %1858 = vrot.lane.b32.xlu0 %v1342, 64
          %v1859 = vpop.permute.xlu0 %1858
          %1860 = vrot.lane.b32.xlu0 %v1344, 64
          %v1861 = vpop.permute.xlu0 %1860
          %1862 = vrot.lane.b32.xlu0 %v1346, 64
          %v1863 = vpop.permute.xlu0 %1862
          %1864 = vrot.lane.b32.xlu0 %v1348, 64
          %v1865 = vpop.permute.xlu0 %1864
          %v1866 = vmul.f32 %v1803, %v1381
          %v1867 = vmul.f32 %v1805, %v1382
          %v1868 = vmul.f32 %v1807, %v1383
          %v1869 = vmul.f32 %v1809, %v1384
          %v1870 = vmul.f32 %v1811, %v1385
          %v1871 = vmul.f32 %v1813, %v1386
          %v1872 = vmul.f32 %v1815, %v1387
          %v1873 = vmul.f32 %v1817, %v1388
          %v1874 = vmul.f32 %v1819, %v1389
          %v1875 = vmul.f32 %v1821, %v1390
          %v1876 = vmul.f32 %v1823, %v1391
          %v1877 = vmul.f32 %v1825, %v1392
          %v1878 = vmul.f32 %v1827, %v1393
          %v1879 = vmul.f32 %v1829, %v1394
          %v1880 = vmul.f32 %v1831, %v1395
          %v1881 = vmul.f32 %v1833, %v1396
          %v1882 = vmul.f32 %v1835, %v1397
          %v1883 = vmul.f32 %v1837, %v1398
          %v1884 = vmul.f32 %v1839, %v1399
          %v1885 = vmul.f32 %v1841, %v1400
          %v1886 = vmul.f32 %v1843, %v1401
          %v1887 = vmul.f32 %v1845, %v1402
          %v1888 = vmul.f32 %v1847, %v1403
          %v1889 = vmul.f32 %v1849, %v1404
          %v1890 = vmul.f32 %v1851, %v1405
          %v1891 = vmul.f32 %v1853, %v1406
          %v1892 = vmul.f32 %v1855, %v1407
          %v1893 = vmul.f32 %v1857, %v1408
          %v1894 = vmul.f32 %v1859, %v1409
          %v1895 = vmul.f32 %v1861, %v1410
          %v1896 = vmul.f32 %v1863, %v1411
          %v1897 = vmul.f32 %v1865, %v1412
          %v1898 = vadd.f32 %v1770, %v1866
          %v1899 = vadd.f32 %v1771, %v1867
          %v1900 = vadd.f32 %v1772, %v1868
          %v1901 = vadd.f32 %v1773, %v1869
          %v1902 = vadd.f32 %v1774, %v1870
          %v1903 = vadd.f32 %v1775, %v1871
          %v1904 = vadd.f32 %v1776, %v1872
          %v1905 = vadd.f32 %v1777, %v1873
          %v1906 = vadd.f32 %v1778, %v1874
          %v1907 = vadd.f32 %v1779, %v1875
          %v1908 = vadd.f32 %v1780, %v1876
          %v1909 = vadd.f32 %v1781, %v1877
          %v1910 = vadd.f32 %v1782, %v1878
          %v1911 = vadd.f32 %v1783, %v1879
          %v1912 = vadd.f32 %v1784, %v1880
          %v1913 = vadd.f32 %v1785, %v1881
          %v1914 = vadd.f32 %v1786, %v1882
          %v1915 = vadd.f32 %v1787, %v1883
          %v1916 = vadd.f32 %v1788, %v1884
          %v1917 = vadd.f32 %v1789, %v1885
          %v1918 = vadd.f32 %v1790, %v1886
          %v1919 = vadd.f32 %v1791, %v1887
          %v1920 = vadd.f32 %v1792, %v1888
          %v1921 = vadd.f32 %v1793, %v1889
          %v1922 = vadd.f32 %v1794, %v1890
          %v1923 = vadd.f32 %v1795, %v1891
          %v1924 = vadd.f32 %v1796, %v1892
          %v1925 = vadd.f32 %v1797, %v1893
          %v1926 = vadd.f32 %v1798, %v1894
          %v1927 = vadd.f32 %v1799, %v1895
          %v1928 = vadd.f32 %v1800, %v1896
          %v1929 = vadd.f32 %v1801, %v1897
          %s1930 = sadd.s32 %s1573, 1
          %p1931 = scmp.lt.s32.totalorder %s1930, 3
          %s1932 = scalar_select %p1931, 1, 0
          %v1933 = vstv %s1932
          %vm1934 = vcmp.eq.s32.totalorder %v1933, 1
          %v1935 = vsel %vm1934, %v1898, %v1286
          %v1936 = vsel %vm1934, %v1899, %v1288
          %v1937 = vsel %vm1934, %v1900, %v1290
          %v1938 = vsel %vm1934, %v1901, %v1292
          %v1939 = vsel %vm1934, %v1902, %v1294
          %v1940 = vsel %vm1934, %v1903, %v1296
          %v1941 = vsel %vm1934, %v1904, %v1298
          %v1942 = vsel %vm1934, %v1905, %v1300
          %v1943 = vsel %vm1934, %v1906, %v1302
          %v1944 = vsel %vm1934, %v1907, %v1304
          %v1945 = vsel %vm1934, %v1908, %v1306
          %v1946 = vsel %vm1934, %v1909, %v1308
          %v1947 = vsel %vm1934, %v1910, %v1310
          %v1948 = vsel %vm1934, %v1911, %v1312
          %v1949 = vsel %vm1934, %v1912, %v1314
          %v1950 = vsel %vm1934, %v1913, %v1316
          %v1951 = vsel %vm1934, %v1914, %v1318
          %v1952 = vsel %vm1934, %v1915, %v1320
          %v1953 = vsel %vm1934, %v1916, %v1322
          %v1954 = vsel %vm1934, %v1917, %v1324
          %v1955 = vsel %vm1934, %v1918, %v1326
          %v1956 = vsel %vm1934, %v1919, %v1328
          %v1957 = vsel %vm1934, %v1920, %v1330
          %v1958 = vsel %vm1934, %v1921, %v1332
          %v1959 = vsel %vm1934, %v1922, %v1334
          %v1960 = vsel %vm1934, %v1923, %v1336
          %v1961 = vsel %vm1934, %v1924, %v1338
          %v1962 = vsel %vm1934, %v1925, %v1340
          %v1963 = vsel %vm1934, %v1926, %v1342
          %v1964 = vsel %vm1934, %v1927, %v1344
          %v1965 = vsel %vm1934, %v1928, %v1346
          %v1966 = vsel %vm1934, %v1929, %v1348
          %v1967 = vpack.c.bf16 %v1936, %v1935
          %v1968 = vpack.c.bf16 %v1938, %v1937
          %v1969 = vpack.c.bf16 %v1940, %v1939
          %v1970 = vpack.c.bf16 %v1942, %v1941
          %v1971 = vpack.c.bf16 %v1944, %v1943
          %v1972 = vpack.c.bf16 %v1946, %v1945
          %v1973 = vpack.c.bf16 %v1948, %v1947
          %v1974 = vpack.c.bf16 %v1950, %v1949
          %v1975 = vpack.c.bf16 %v1952, %v1951
          %v1976 = vpack.c.bf16 %v1954, %v1953
          %v1977 = vpack.c.bf16 %v1956, %v1955
          %v1978 = vpack.c.bf16 %v1958, %v1957
          %v1979 = vpack.c.bf16 %v1960, %v1959
          %v1980 = vpack.c.bf16 %v1962, %v1961
          %v1981 = vpack.c.bf16 %v1964, %v1963
          %v1982 = vpack.c.bf16 %v1966, %v1965
          %v1999 = vunpack.c.l.b16 %v1967
          %v2000 = vunpack.c.h.b16 %v1967
          %v2001 = vunpack.c.l.b16 %v1968
          %v2002 = vunpack.c.h.b16 %v1968
          %v2003 = vunpack.c.l.b16 %v1969
          %v2004 = vunpack.c.h.b16 %v1969
          %v2005 = vunpack.c.l.b16 %v1970
          %v2006 = vunpack.c.h.b16 %v1970
          %v2007 = vunpack.c.l.b16 %v1971
          %v2008 = vunpack.c.h.b16 %v1971
          %v2009 = vunpack.c.l.b16 %v1972
          %v2010 = vunpack.c.h.b16 %v1972
          %v2011 = vunpack.c.l.b16 %v1973
          %v2012 = vunpack.c.h.b16 %v1973
          %v2013 = vunpack.c.l.b16 %v1974
          %v2014 = vunpack.c.h.b16 %v1974
          %v2015 = vunpack.c.l.b16 %v1975
          %v2016 = vunpack.c.h.b16 %v1975
          %v2017 = vunpack.c.l.b16 %v1976
          %v2018 = vunpack.c.h.b16 %v1976
          %v2019 = vunpack.c.l.b16 %v1977
          %v2020 = vunpack.c.h.b16 %v1977
          %v2021 = vunpack.c.l.b16 %v1978
          %v2022 = vunpack.c.h.b16 %v1978
          %v2023 = vunpack.c.l.b16 %v1979
          %v2024 = vunpack.c.h.b16 %v1979
          %v2025 = vunpack.c.l.b16 %v1980
          %v2026 = vunpack.c.h.b16 %v1980
          %v2027 = vunpack.c.l.b16 %v1981
          %v2028 = vunpack.c.h.b16 %v1981
          %v2029 = vunpack.c.l.b16 %v1982
          %v2030 = vunpack.c.h.b16 %v1982
          %v2031 = vpack.c.b16 %v1999, %v1999
          %v2032 = vpack.c.b16 %v2000, %v2000
          %v2033 = vpack.c.b16 %v2001, %v2001
          %v2034 = vpack.c.b16 %v2002, %v2002
          %v2035 = vpack.c.b16 %v2003, %v2003
          %v2036 = vpack.c.b16 %v2004, %v2004
          %v2037 = vpack.c.b16 %v2005, %v2005
          %v2038 = vpack.c.b16 %v2006, %v2006
          %v2039 = vpack.c.b16 %v2007, %v2007
          %v2040 = vpack.c.b16 %v2008, %v2008
          %v2041 = vpack.c.b16 %v2009, %v2009
          %v2042 = vpack.c.b16 %v2010, %v2010
          %v2043 = vpack.c.b16 %v2011, %v2011
          %v2044 = vpack.c.b16 %v2012, %v2012
          %v2045 = vpack.c.b16 %v2013, %v2013
          %v2046 = vpack.c.b16 %v2014, %v2014
          %v2047 = vpack.c.b16 %v2015, %v2015
          %v2048 = vpack.c.b16 %v2016, %v2016
          %v2049 = vpack.c.b16 %v2017, %v2017
          %v2050 = vpack.c.b16 %v2018, %v2018
          %v2051 = vpack.c.b16 %v2019, %v2019
          %v2052 = vpack.c.b16 %v2020, %v2020
          %v2053 = vpack.c.b16 %v2021, %v2021
          %v2054 = vpack.c.b16 %v2022, %v2022
          %v2055 = vpack.c.b16 %v2023, %v2023
          %v2056 = vpack.c.b16 %v2024, %v2024
          %v2057 = vpack.c.b16 %v2025, %v2025
          %v2058 = vpack.c.b16 %v2026, %v2026
          %v2059 = vpack.c.b16 %v2027, %v2027
          %v2060 = vpack.c.b16 %v2028, %v2028
          %v2061 = vpack.c.b16 %v2029, %v2029
          %v2062 = vpack.c.b16 %v2030, %v2030
          %2095 = vst [vmem:[%s355 + $0x4] sm:$0xf] %v2031
          %2096 = vst [vmem:[%s355 + $0xc] sm:$0xf] %v2032
          %2097 = vst [vmem:[%s355 + $0x14] sm:$0xf] %v2033
          %2098 = vst [vmem:[%s355 + $0x1c] sm:$0xf] %v2034
          %2099 = vst [vmem:[%s355 + $0x24] sm:$0xf] %v2035
          %2100 = vst [vmem:[%s355 + $0x2c] sm:$0xf] %v2036
          %2101 = vst [vmem:[%s355 + $0x34] sm:$0xf] %v2037
          %2102 = vst [vmem:[%s355 + $0x3c] sm:$0xf] %v2038
          %2103 = vst [vmem:[%s355 + $0x44] sm:$0xf] %v2039
          %2104 = vst [vmem:[%s355 + $0x4c] sm:$0xf] %v2040
          %2105 = vst [vmem:[%s355 + $0x54] sm:$0xf] %v2041
          %2106 = vst [vmem:[%s355 + $0x5c] sm:$0xf] %v2042
          %2107 = vst [vmem:[%s355 + $0x64] sm:$0xf] %v2043
          %2108 = vst [vmem:[%s355 + $0x6c] sm:$0xf] %v2044
          %2109 = vst [vmem:[%s355 + $0x74] sm:$0xf] %v2045
          %2110 = vst [vmem:[%s355 + $0x7c] sm:$0xf] %v2046
          %2111 = vst [vmem:[%s355 + $0x84] sm:$0xf] %v2047
          %2112 = vst [vmem:[%s355 + $0x8c] sm:$0xf] %v2048
          %2113 = vst [vmem:[%s355 + $0x94] sm:$0xf] %v2049
          %2114 = vst [vmem:[%s355 + $0x9c] sm:$0xf] %v2050
          %2115 = vst [vmem:[%s355 + $0xa4] sm:$0xf] %v2051
          %2116 = vst [vmem:[%s355 + $0xac] sm:$0xf] %v2052
          %2117 = vst [vmem:[%s355 + $0xb4] sm:$0xf] %v2053
          %2118 = vst [vmem:[%s355 + $0xbc] sm:$0xf] %v2054
          %2119 = vst [vmem:[%s355 + $0xc4] sm:$0xf] %v2055
          %2120 = vst [vmem:[%s355 + $0xcc] sm:$0xf] %v2056
          %2121 = vst [vmem:[%s355 + $0xd4] sm:$0xf] %v2057
          %2122 = vst [vmem:[%s355 + $0xdc] sm:$0xf] %v2058
          %2123 = vst [vmem:[%s355 + $0xe4] sm:$0xf] %v2059
          %2124 = vst [vmem:[%s355 + $0xec] sm:$0xf] %v2060
          %2125 = vst [vmem:[%s355 + $0xf4] sm:$0xf] %v2061
          %2126 = vst [vmem:[%s355 + $0xfc] sm:$0xf] %v2062
        $region64: #{tpu_custom_call.1} parent=39 // pred_fallthru
          _
        %s2127 = sand.u32 %s187, 1
        %s2128 = scalar_lea.sflag [#allocation5], %s2127
        %s2129 = sand.u32 %s187, 1
        %s2130 = smul.addr %s2129, 256
        %s2131 = scalar_lea.vmem [#allocation11], %s2130
        // Predicated region
        $region65: #{tpu_custom_call.1} parent=39 // pred_check
          %p2132 = pneg %p197
        $region66: #{tpu_custom_call.1} parent=39 // pred_check_branch
          %2134 = sbr.rel (%p2132) target = $region68
        $region67: #{tpu_custom_call.1} parent=39 // pred_region
          %s2135 = smul.u32 32, %s29
          %s2136 = smul.u32 2, %s30
          %s2138 = ssub.s32 4096, 4096
          %2139 = vsyncadd %s2128, %s2138
          %s2140 = smul.addr %s2135, 4
          %s2141 = sadd.s32 %s2136, %s2140
          %s2142 = smul.addr %s2141, 64
          %s2143 = scalar_lea.hbm %s5, %s2142
          %s2144 = sshll.u32 %s2131, 4
          %s2145 = int_to_ptr.vmem [resolvable:$true] %s2144
          %2150 = dma.vmem_to_hbm [thread:$0]  %s2145, 4096, %s2143, %s2128, 128, 256, 8
        $region68: #{tpu_custom_call.1} parent=39 // pred_fallthru
          _
      $region40: #{tpu_custom_call.1} parent=5 // pred_fallthru
        _
      %p2151 = scmp.le.s32.totalorder 2, %s19
      // Predicated region
      $region69: #{tpu_custom_call.1} parent=5 // pred_check
        %p2152 = pneg %p2151
      $region70: #{tpu_custom_call.1} parent=5 // pred_check_branch
        %2154 = sbr.rel (%p2152) target = $region72
      $region71: #{tpu_custom_call.1} parent=5 // pred_region
        %s2155 = ssub.s32 %s19, 2
        // Predicated region
        $region73: #{tpu_custom_call.1} parent=71 // pred_check
          %p2156 = pneg %p203
        $region74: #{tpu_custom_call.1} parent=71 // pred_check_branch
          %2158 = sbr.rel (%p2156) target = $region76
        $region75: #{tpu_custom_call.1} parent=71 // pred_region
          %s2159 = sand.u32 %s188, 1
          %s2160 = scalar_lea.sflag [#allocation5], %s2159
          %s2161 = sand.u32 %s188, 1
          %s2162 = smul.addr %s2161, 256
          %s2163 = scalar_lea.vmem [#allocation11], %s2162
          %2164 = dma.done %s2160, 4096
        $region76: #{tpu_custom_call.1} parent=71 // pred_fallthru
          _
      $region72: #{tpu_custom_call.1} parent=5 // pred_fallthru
        _
    $region6: #{tpu_custom_call.1} parent=1 // loop_footer
      %s23 = sadd.s32 1, %s19
    $region7: #{tpu_custom_call.1} parent=1 // loop_footer_branch
      %18 = sbr.rel target = $region3
    $region8: #{tpu_custom_call.1} parent=1 // loop_exit
      _
    %2165 = vsyncpa [#allocation4], 1
    %s2166 = scalar_lea.sflag [#allocation4], 1
    %2167 = vsyncpa %s2166, 1
    %2168 = vsyncpa [#allocation7], 1
    %s2169 = scalar_lea.sflag [#allocation7], 1
    %2170 = vsyncpa %s2169, 1
    %2171 = vsyncpa [#allocation10], 1
    %2172 = vsyncpa [#allocation5], 1
    %s2173 = scalar_lea.sflag [#allocation5], 1
    %2174 = vsyncpa %s2173, 1

</llo_original>
